<compile_context>
chip_gen: v6e
topology: v6e:2x2x1
jax: 0.10.0
libtpu: 0.0.40
codegen_flags: <defaults>
</compile_context>

<pallas_src>
import math
import jax
import jax.numpy as jnp
from jax import lax
from jax.experimental import pallas as pl
from jax.experimental.pallas import tpu as pltpu

# Small synthetic BERT config (real BERT-base: H=768, 12 layers, 12 heads).
VOCAB = 100
MAX_SEQ = 16
NUM_LAYERS = 2
NUM_HEADS = 4
HEAD_DIM = 8
HIDDEN = NUM_HEADS * HEAD_DIM    # 32
FFN = 64
LN_EPS = 1e-12
NEG_INF = -1e9

QKV = 3 * HIDDEN                 # fused q|k|v slab width (96)
assert FFN <= QKV, "b1 is packed into a QKV-wide row of the vector slab"


# ----------------------------- kernel helpers -----------------------------

def _layernorm(x, gamma, beta):
    mean = jnp.mean(x, axis=-1, keepdims=True)
    var = jnp.mean((x - mean) ** 2, axis=-1, keepdims=True)
    inv = lax.rsqrt(var + LN_EPS)
    return (x - mean) * inv * gamma + beta


def _bf16(x):
    return x.astype(jnp.bfloat16)


# ------------------------------ fused kernel -------------------------------

def bert_fused_kernel(idx_ref,          # SMEM scalar prefetch: (B, W) int32
                      emb_ref,          # (S, H) f32   embeddings (batch squeezed)
                      mask_ref,         # (1, S) f32   additive attention mask
                      embln_ref,        # (2, H) f32   embedding LN gamma/beta
                      hm_ref,           # (NUM_HEADS*S, H) f32 block-diag head mask
                      wqkv_ref,         # (L, H, 3H) bf16  fused q|k|v weights
                      wo_ref,           # (L, H, H)  bf16
                      w1_ref,           # (L, H, FFN) bf16
                      w2_ref,           # (L, FFN, H) bf16
                      vec_ref,          # (L, 4, 3H) f32   packed bias/LN slab
                      out_ref,          # (W, H) f32
                      hid_ref):         # VMEM scratch (S, H) f32 (gather staging)
    b = pl.program_id(0)                # top-level only: never inside pl.when/cond
    S, H = hid_ref.shape
    W = out_ref.shape[0]

    head_mask = hm_ref[...]                       # (NUM_HEADS*S, H)
    mask_row = mask_ref[...]                      # (1, S)
    scale = 1.0 / math.sqrt(HEAD_DIM)

    # Embedding layernorm initializes the residual stream.
    x = _layernorm(emb_ref[...], embln_ref[0:1, :], embln_ref[1:2, :])

    for l in range(NUM_LAYERS):                   # static unroll, weights VMEM-resident
        vec = vec_ref[l]                          # (4, 3H) packed per-layer vectors
        bqkv = vec[0:1, :]
        bo   = vec[1:2, 0:H]
        ln1g = vec[1:2, H:2 * H]
        ln1b = vec[1:2, 2 * H:3 * H]
        b2   = vec[2:3, 0:H]
        ln2g = vec[2:3, H:2 * H]
        ln2b = vec[2:3, 2 * H:3 * H]
        b1   = vec[3:4, 0:FFN]

        xb = _bf16(x)

        # ---------------- attention: fused QKV, heads merged on sublanes ----------------
        qkv = jnp.dot(xb, wqkv_ref[l], preferred_element_type=jnp.float32) + bqkv  # (S,3H)
        q = qkv[:, 0:H] * scale                   # softmax scale folded into q (incl. bias)
        k = qkv[:, H:2 * H]
        v = qkv[:, 2 * H:3 * H]

        # Row (h, s) keeps only head h's lanes of q -> one K=H contraction for all heads.
        q_exp = jnp.concatenate([q] * NUM_HEADS, axis=0) * head_mask    # (NUM_HEADS*S, H)
        scores = lax.dot_general(_bf16(q_exp), _bf16(k),
                                 (((1,), (1,)), ((), ())),
                                 preferred_element_type=jnp.float32)    # (NUM_HEADS*S, S)
        scores = scores + mask_row                # broadcast over all head/query rows

        m = jnp.max(scores, axis=-1, keepdims=True)
        e = jnp.exp(scores - m)
        p = e / jnp.sum(e, axis=-1, keepdims=True)

        # One PV push for all heads, mask each head's lanes, collapse head blocks.
        ctx_full = jnp.dot(_bf16(p), _bf16(v),
                           preferred_element_type=jnp.float32)          # (NUM_HEADS*S, H)
        ctx_full = ctx_full * head_mask
        ctx = ctx_full[0:S, :]
        for h in range(1, NUM_HEADS):             # static sublane-block sum (3 adds)
            ctx = ctx + ctx_full[h * S:(h + 1) * S, :]

        attn_out = jnp.dot(_bf16(ctx), wo_ref[l],
                           preferred_element_type=jnp.float32) + bo
        h1 = _layernorm(x + attn_out, ln1g, ln1b)

        # ------------------------------------ FFN ------------------------------------
        ff = jnp.dot(_bf16(h1), w1_ref[l], preferred_element_type=jnp.float32) + b1
        ff = jax.nn.gelu(ff, approximate=True)    # TODO(synk): HF BERT uses exact erf GELU.
        ff = jnp.dot(_bf16(ff), w2_ref[l], preferred_element_type=jnp.float32) + b2
        x = _layernorm(h1 + ff, ln2g, ln2b)

    # ---------------- final word-start gather (torch.gather dim=-2) ----------------
    hid_ref[...] = x                              # stage final hidden state in VMEM
    rows = [hid_ref[pl.ds(idx_ref[b, w], 1), :] for w in range(W)]
    out_ref[...] = jnp.concatenate(rows, axis=0)  # single slab store


# --------------------------- model construction ----------------------------

def init_params(key):
    def normal(k, shape, dtype=jnp.float32):
        return (0.02 * jax.random.normal(k, shape)).astype(dtype)

    keys = jax.random.split(key, 3 + NUM_LAYERS)
    params = {
        "tok_emb": normal(keys[0], (VOCAB, HIDDEN)),
        "pos_emb": normal(keys[1], (MAX_SEQ, HIDDEN)),
        "typ_emb": normal(keys[2], (2, HIDDEN)),
        "emb_ln": jnp.concatenate([jnp.ones((1, HIDDEN), jnp.float32),
                                   jnp.zeros((1, HIDDEN), jnp.float32)], axis=0),  # (2, H)
    }

    wqkv, wo, w1, w2, vec = [], [], [], [], []
    for i in range(NUM_LAYERS):
        k = jax.random.split(keys[3 + i], 12)
        wq = normal(k[0], (HIDDEN, HIDDEN))
        wk = normal(k[1], (HIDDEN, HIDDEN))
        wv = normal(k[2], (HIDDEN, HIDDEN))
        wqkv.append(jnp.concatenate([wq, wk, wv], axis=1).astype(jnp.bfloat16))   # (H, 3H)
        wo.append(normal(k[3], (HIDDEN, HIDDEN), jnp.bfloat16))
        w1.append(normal(k[4], (HIDDEN, FFN), jnp.bfloat16))
        w2.append(normal(k[5], (FFN, HIDDEN), jnp.bfloat16))

        bq = normal(k[6], (1, HIDDEN))
        bk = normal(k[7], (1, HIDDEN))
        bv = normal(k[8], (1, HIDDEN))
        bo = normal(k[9], (1, HIDDEN))
        b1 = normal(k[10], (1, FFN))
        b2 = normal(k[11], (1, HIDDEN))
        ln1g = jnp.ones((1, HIDDEN), jnp.float32)
        ln1b = jnp.zeros((1, HIDDEN), jnp.float32)
        ln2g = jnp.ones((1, HIDDEN), jnp.float32)
        ln2b = jnp.zeros((1, HIDDEN), jnp.float32)

        row0 = jnp.concatenate([bq, bk, bv], axis=1)                      # (1, 3H)
        row1 = jnp.concatenate([bo, ln1g, ln1b], axis=1)                  # (1, 3H)
        row2 = jnp.concatenate([b2, ln2g, ln2b], axis=1)                  # (1, 3H)
        row3 = jnp.concatenate([b1, jnp.zeros((1, QKV - FFN), jnp.float32)], axis=1)
        vec.append(jnp.concatenate([row0, row1, row2, row3], axis=0))     # (4, 3H)

    params["wqkv"] = jnp.stack(wqkv, axis=0)      # (L, H, 3H)
    params["wo"] = jnp.stack(wo, axis=0)          # (L, H, H)
    params["w1"] = jnp.stack(w1, axis=0)          # (L, H, FFN)
    params["w2"] = jnp.stack(w2, axis=0)          # (L, FFN, H)
    params["vec"] = jnp.stack(vec, axis=0)        # (L, 4, 3H)
    return params


# ------------------------------- forward -----------------------------------

def bert_forward(params, pad_subword_tokens, pad_attn_mask, pad_word_start, word_size):
    """Mirrors BERT.forward: encode, then gather hidden states at word-start positions.

    word_size is accepted for signature parity but (as in the reference module)
    is unused by the forward computation.
    """
    del word_size
    B, S = pad_subword_tokens.shape
    W = pad_word_start.shape[1]
    H, L = HIDDEN, NUM_LAYERS
    HS = NUM_HEADS * S

    # Embedding lookup is glue; the embedding layernorm runs inside the fused kernel.
    tok_emb = jnp.take(params["tok_emb"], pad_subword_tokens, axis=0)      # (B, S, H)
    pos_emb = params["pos_emb"][:S][None, :, :]
    typ_emb = params["typ_emb"][0][None, None, :]                          # token_type_ids == 0
    emb = (tok_emb + pos_emb + typ_emb).astype(jnp.float32)
    # TODO(synk): dropout omitted (inference-mode identity).

    # HF-style additive attention mask: 0 where attended, -1e9 where padded.
    mask_bias = (1.0 - pad_attn_mask.astype(jnp.float32))[:, None, :] * NEG_INF  # (B, 1, S)

    # Block-diagonal head mask, hoisted out of the kernel (layer-invariant constant).
    row_head = jnp.arange(HS)[:, None] // S
    col_head = jnp.arange(H)[None, :] // HEAD_DIM
    head_mask = (row_head == col_head).astype(jnp.float32)                 # (HS, H)

    idx = pad_word_start.astype(jnp.int32)                                 # (B, W)

    def per_batch(shape3):    # per-batch activation blocks (leading dim squeezed)
        return pl.BlockSpec((None,) + tuple(shape3[1:]), lambda b, idx_ref: (b, 0, 0))

    def resident2d(shape2):   # constants fetched once, resident across the grid
        return pl.BlockSpec(tuple(shape2), lambda b, idx_ref: (0, 0))

    def resident3d(shape3):   # stacked per-layer weights, resident across the grid
        return pl.BlockSpec(tuple(shape3), lambda b, idx_ref: (0, 0, 0))

    in_specs = [
        per_batch((B, S, H)),            # embeddings
        per_batch((B, 1, S)),            # additive attention mask
        resident2d((2, H)),              # embedding LN gamma/beta
        resident2d((HS, H)),             # block-diagonal head mask
        resident3d((L, H, QKV)),         # fused wqkv
        resident3d((L, H, H)),           # wo
        resident3d((L, H, FFN)),         # w1
        resident3d((L, FFN, H)),         # w2
        resident3d((L, 4, QKV)),         # packed bias/LN slab
    ]

    return pl.pallas_call(
        bert_fused_kernel,
        out_shape=jax.ShapeDtypeStruct((B, W, H), jnp.float32),
        grid_spec=pltpu.PrefetchScalarGridSpec(
            num_scalar_prefetch=1,       # word-start indices -> SMEM
            grid=(B,),                   # batch only; layers unrolled inside the kernel
            in_specs=in_specs,
            out_specs=pl.BlockSpec((None, W, H), lambda b, idx_ref: (b, 0, 0)),
            scratch_shapes=[pltpu.VMEM((S, H), jnp.float32)],   # gather staging
        ),
        compiler_params=pltpu.CompilerParams(
            dimension_semantics=("parallel",)),   # B=2 keeps both v7x TensorCores busy
    )(idx, emb, mask_bias, params["emb_ln"], head_mask,
      params["wqkv"], params["wo"], params["w1"], params["w2"], params["vec"])


# ----------------------------------- main -----------------------------------

if __name__ == "__main__":
    key = jax.random.PRNGKey(0)
    k_param, k_tok = jax.random.split(key)

    B, S, W = 2, 8, 5
    params = init_params(k_param)

    pad_subword_tokens = jax.random.randint(k_tok, (B, S), 0, VOCAB, dtype=jnp.int32)
    pad_attn_mask = jnp.array([[1, 1, 1, 1, 1, 1, 1, 1],
                               [1, 1, 1, 1, 1, 1, 0, 0]], dtype=jnp.int32)
    pad_word_start = jnp.array([[0, 1, 3, 5, 7],
                                [0, 2, 4, 0, 0]], dtype=jnp.int32)
    word_size = jnp.array([5, 3], dtype=jnp.int32)

    out = bert_forward(params, pad_subword_tokens, pad_attn_mask,
                       pad_word_start, word_size)
    out = jax.block_until_ready(out)
    assert out.shape == (B, W, HIDDEN), out.shape
    assert bool(jnp.all(jnp.isfinite(out)))
    print("KERNEL_OK")
</pallas_src>

<mosaic_0001>
module attributes {stable_mosaic.version = 11 : i64} {
  func.func @bert_fused_kernel(%arg0: i32, %arg1: memref<2x5xi32, #tpu.memory_space<smem>>, %arg2: memref<1x8x32xf32, #tpu.memory_space<vmem>>, %arg3: memref<1x1x8xf32, #tpu.memory_space<vmem>>, %arg4: memref<2x32xf32, #tpu.memory_space<vmem>>, %arg5: memref<32x32xf32, #tpu.memory_space<vmem>>, %arg6: memref<2x32x96xbf16, #tpu.memory_space<vmem>>, %arg7: memref<2x32x32xbf16, #tpu.memory_space<vmem>>, %arg8: memref<2x32x64xbf16, #tpu.memory_space<vmem>>, %arg9: memref<2x64x32xbf16, #tpu.memory_space<vmem>>, %arg10: memref<2x4x96xf32, #tpu.memory_space<vmem>>, %arg11: memref<1x5x32xf32, #tpu.memory_space<vmem>>, %arg12: memref<8x32xf32, #tpu.memory_space<vmem>>) attributes {dimension_semantics = [#tpu.dimension_semantics<parallel>], iteration_bounds = array<i64: 2>, scalar_prefetch = 1 : i64, scratch_operands = 1 : i64, tpu.core_type = #tpu.core_type<tc>, window_params = [{transform_indices = @transform_0, window_bounds = array<i64: 1, 8, 32>}, {transform_indices = @transform_1, window_bounds = array<i64: 1, 1, 8>}, {pipeline_mode = #tpu.pipeline_mode<synchronous>, transform_indices = @transform_2, window_bounds = array<i64: 2, 32>}, {pipeline_mode = #tpu.pipeline_mode<synchronous>, transform_indices = @transform_3, window_bounds = array<i64: 32, 32>}, {pipeline_mode = #tpu.pipeline_mode<synchronous>, transform_indices = @transform_4, window_bounds = array<i64: 2, 32, 96>}, {pipeline_mode = #tpu.pipeline_mode<synchronous>, transform_indices = @transform_5, window_bounds = array<i64: 2, 32, 32>}, {pipeline_mode = #tpu.pipeline_mode<synchronous>, transform_indices = @transform_6, window_bounds = array<i64: 2, 32, 64>}, {pipeline_mode = #tpu.pipeline_mode<synchronous>, transform_indices = @transform_7, window_bounds = array<i64: 2, 64, 32>}, {pipeline_mode = #tpu.pipeline_mode<synchronous>, transform_indices = @transform_8, window_bounds = array<i64: 2, 4, 96>}, {transform_indices = @transform_9, window_bounds = array<i64: 1, 5, 32>}]} {
    %c0 = arith.constant 0 : index
    %c0_0 = arith.constant 0 : index
    %0 = vector.load %arg5[%c0, %c0_0] : memref<32x32xf32, #tpu.memory_space<vmem>>, vector<32x32xf32>
    %c0_1 = arith.constant 0 : index
    %c0_2 = arith.constant 0 : index
    %c0_3 = arith.constant 0 : index
    %1 = vector.load %arg3[%c0_1, %c0_2, %c0_3] : memref<1x1x8xf32, #tpu.memory_space<vmem>>, vector<1x1x8xf32>
    %2 = vector.shape_cast %1 : vector<1x1x8xf32> to vector<1x8xf32>
    %c0_4 = arith.constant 0 : index
    %c0_5 = arith.constant 0 : index
    %c0_6 = arith.constant 0 : index
    %3 = vector.load %arg2[%c0_4, %c0_5, %c0_6] : memref<1x8x32xf32, #tpu.memory_space<vmem>>, vector<1x8x32xf32>
    %4 = vector.shape_cast %3 : vector<1x8x32xf32> to vector<8x32xf32>
    %c0_7 = arith.constant 0 : index
    %c0_8 = arith.constant 0 : index
    %5 = vector.load %arg4[%c0_7, %c0_8] : memref<2x32xf32, #tpu.memory_space<vmem>>, vector<1x32xf32>
    %c1 = arith.constant 1 : index
    %c0_9 = arith.constant 0 : index
    %6 = vector.load %arg4[%c1, %c0_9] : memref<2x32xf32, #tpu.memory_space<vmem>>, vector<1x32xf32>
    %cst = arith.constant dense<0.000000e+00> : vector<8xf32>
    %7 = vector.multi_reduction <add>, %4, %cst [1] : vector<8x32xf32> to vector<8xf32>
    %8 = vector.shape_cast %7 : vector<8xf32> to vector<8x1xf32>
    %cst_10 = arith.constant 3.200000e+01 : f32
    %9 = vector.broadcast %cst_10 : f32 to vector<8x1xf32>
    %10 = arith.divf %8, %9 : vector<8x1xf32>
    %11 = vector.broadcast %10 : vector<8x1xf32> to vector<8x32xf32>
    %12 = arith.subf %4, %11 : vector<8x32xf32>
    %13 = arith.mulf %12, %12 : vector<8x32xf32>
    %cst_11 = arith.constant dense<0.000000e+00> : vector<8xf32>
    %14 = vector.multi_reduction <add>, %13, %cst_11 [1] : vector<8x32xf32> to vector<8xf32>
    %15 = vector.shape_cast %14 : vector<8xf32> to vector<8x1xf32>
    %cst_12 = arith.constant 3.200000e+01 : f32
    %16 = vector.broadcast %cst_12 : f32 to vector<8x1xf32>
    %17 = arith.divf %15, %16 : vector<8x1xf32>
    %cst_13 = arith.constant 9.99999996E-13 : f32
    %18 = vector.broadcast %cst_13 : f32 to vector<8x1xf32>
    %19 = arith.addf %17, %18 : vector<8x1xf32>
    %20 = math.rsqrt %19 : vector<8x1xf32>
    %21 = vector.broadcast %10 : vector<8x1xf32> to vector<8x32xf32>
    %22 = arith.subf %4, %21 : vector<8x32xf32>
    %23 = vector.broadcast %20 : vector<8x1xf32> to vector<8x32xf32>
    %24 = arith.mulf %22, %23 : vector<8x32xf32>
    %25 = vector.broadcast %5 : vector<1x32xf32> to vector<8x32xf32>
    %26 = arith.mulf %24, %25 : vector<8x32xf32>
    %27 = vector.broadcast %6 : vector<1x32xf32> to vector<8x32xf32>
    %28 = arith.addf %26, %27 : vector<8x32xf32>
    %c0_14 = arith.constant 0 : index
    %c0_15 = arith.constant 0 : index
    %c0_16 = arith.constant 0 : index
    %29 = vector.load %arg10[%c0_14, %c0_15, %c0_16] : memref<2x4x96xf32, #tpu.memory_space<vmem>>, vector<1x4x96xf32>
    %30 = vector.shape_cast %29 : vector<1x4x96xf32> to vector<4x96xf32>
    %31 = vector.extract_strided_slice %30 {offsets = [0, 0], sizes = [1, 96], strides = [1, 1]} : vector<4x96xf32> to vector<1x96xf32>
    %32 = vector.extract_strided_slice %30 {offsets = [1, 0], sizes = [1, 32], strides = [1, 1]} : vector<4x96xf32> to vector<1x32xf32>
    %33 = vector.extract_strided_slice %30 {offsets = [1, 32], sizes = [1, 32], strides = [1, 1]} : vector<4x96xf32> to vector<1x32xf32>
    %34 = vector.extract_strided_slice %30 {offsets = [1, 64], sizes = [1, 32], strides = [1, 1]} : vector<4x96xf32> to vector<1x32xf32>
    %35 = vector.extract_strided_slice %30 {offsets = [2, 0], sizes = [1, 32], strides = [1, 1]} : vector<4x96xf32> to vector<1x32xf32>
    %36 = vector.extract_strided_slice %30 {offsets = [2, 32], sizes = [1, 32], strides = [1, 1]} : vector<4x96xf32> to vector<1x32xf32>
    %37 = vector.extract_strided_slice %30 {offsets = [2, 64], sizes = [1, 32], strides = [1, 1]} : vector<4x96xf32> to vector<1x32xf32>
    %38 = vector.extract_strided_slice %30 {offsets = [3, 0], sizes = [1, 64], strides = [1, 1]} : vector<4x96xf32> to vector<1x64xf32>
    %39 = arith.truncf %28 : vector<8x32xf32> to vector<8x32xbf16>
    %c0_17 = arith.constant 0 : index
    %c0_18 = arith.constant 0 : index
    %c0_19 = arith.constant 0 : index
    %40 = vector.load %arg6[%c0_17, %c0_18, %c0_19] : memref<2x32x96xbf16, #tpu.memory_space<vmem>>, vector<1x32x96xbf16>
    %41 = vector.shape_cast %40 : vector<1x32x96xbf16> to vector<32x96xbf16>
    %cst_20 = arith.constant dense<0.000000e+00> : vector<8x96xf32>
    %42 = tpu.matmul %39, %41, %cst_20 {dimension_numbers = #tpu.dot_dimension_numbers<[1], [0], [0], [1], [0, 0, 1, 1], [], []>} : vector<8x32xbf16>, vector<32x96xbf16>, vector<8x96xf32> -> vector<8x96xf32>
    %43 = vector.broadcast %31 : vector<1x96xf32> to vector<8x96xf32>
    %44 = arith.addf %42, %43 : vector<8x96xf32>
    %45 = vector.extract_strided_slice %44 {offsets = [0, 0], sizes = [8, 32], strides = [1, 1]} : vector<8x96xf32> to vector<8x32xf32>
    %cst_21 = arith.constant 0.353553385 : f32
    %46 = vector.broadcast %cst_21 : f32 to vector<8x32xf32>
    %47 = arith.mulf %45, %46 : vector<8x32xf32>
    %48 = vector.extract_strided_slice %44 {offsets = [0, 32], sizes = [8, 32], strides = [1, 1]} : vector<8x96xf32> to vector<8x32xf32>
    %49 = vector.extract_strided_slice %44 {offsets = [0, 64], sizes = [8, 32], strides = [1, 1]} : vector<8x96xf32> to vector<8x32xf32>
    %50 = tpu.concatenate %47, %47, %47, %47 in 0 : vector<8x32xf32>, vector<8x32xf32>, vector<8x32xf32>, vector<8x32xf32> -> vector<32x32xf32>
    %51 = arith.mulf %50, %0 : vector<32x32xf32>
    %52 = arith.truncf %51 : vector<32x32xf32> to vector<32x32xbf16>
    %53 = arith.truncf %48 : vector<8x32xf32> to vector<8x32xbf16>
    %cst_22 = arith.constant dense<0.000000e+00> : vector<32x8xf32>
    %54 = tpu.matmul %52, %53, %cst_22 {dimension_numbers = #tpu.dot_dimension_numbers<[1], [1], [0], [0], [0, 0, 1, 0], [], []>} : vector<32x32xbf16>, vector<8x32xbf16>, vector<32x8xf32> -> vector<32x8xf32>
    %55 = vector.broadcast %2 : vector<1x8xf32> to vector<32x8xf32>
    %56 = arith.addf %54, %55 : vector<32x8xf32>
    %cst_23 = arith.constant dense<0xFF800000> : vector<32xf32>
    %57 = vector.multi_reduction <maximumf>, %56, %cst_23 [1] : vector<32x8xf32> to vector<32xf32>
    %58 = vector.shape_cast %57 : vector<32xf32> to vector<32x1xf32>
    %59 = vector.broadcast %58 : vector<32x1xf32> to vector<32x8xf32>
    %60 = arith.subf %56, %59 : vector<32x8xf32>
    %61 = math.exp %60 : vector<32x8xf32>
    %cst_24 = arith.constant dense<0.000000e+00> : vector<32xf32>
    %62 = vector.multi_reduction <add>, %61, %cst_24 [1] : vector<32x8xf32> to vector<32xf32>
    %63 = vector.shape_cast %62 : vector<32xf32> to vector<32x1xf32>
    %64 = vector.broadcast %63 : vector<32x1xf32> to vector<32x8xf32>
    %65 = arith.divf %61, %64 : vector<32x8xf32>
    %66 = arith.truncf %65 : vector<32x8xf32> to vector<32x8xbf16>
    %67 = arith.truncf %49 : vector<8x32xf32> to vector<8x32xbf16>
    %cst_25 = arith.constant dense<0.000000e+00> : vector<32x32xf32>
    %68 = tpu.matmul %66, %67, %cst_25 {dimension_numbers = #tpu.dot_dimension_numbers<[1], [0], [0], [1], [0, 0, 1, 1], [], []>} : vector<32x8xbf16>, vector<8x32xbf16>, vector<32x32xf32> -> vector<32x32xf32>
    %69 = arith.mulf %68, %0 : vector<32x32xf32>
    %70 = vector.extract_strided_slice %69 {offsets = [0, 0], sizes = [8, 32], strides = [1, 1]} : vector<32x32xf32> to vector<8x32xf32>
    %71 = vector.extract_strided_slice %69 {offsets = [8, 0], sizes = [8, 32], strides = [1, 1]} : vector<32x32xf32> to vector<8x32xf32>
    %72 = arith.addf %70, %71 : vector<8x32xf32>
    %73 = vector.extract_strided_slice %69 {offsets = [16, 0], sizes = [8, 32], strides = [1, 1]} : vector<32x32xf32> to vector<8x32xf32>
    %74 = arith.addf %72, %73 : vector<8x32xf32>
    %75 = vector.extract_strided_slice %69 {offsets = [24, 0], sizes = [8, 32], strides = [1, 1]} : vector<32x32xf32> to vector<8x32xf32>
    %76 = arith.addf %74, %75 : vector<8x32xf32>
    %77 = arith.truncf %76 : vector<8x32xf32> to vector<8x32xbf16>
    %c0_26 = arith.constant 0 : index
    %c0_27 = arith.constant 0 : index
    %c0_28 = arith.constant 0 : index
    %78 = vector.load %arg7[%c0_26, %c0_27, %c0_28] : memref<2x32x32xbf16, #tpu.memory_space<vmem>>, vector<1x32x32xbf16>
    %79 = vector.shape_cast %78 : vector<1x32x32xbf16> to vector<32x32xbf16>
    %cst_29 = arith.constant dense<0.000000e+00> : vector<8x32xf32>
    %80 = tpu.matmul %77, %79, %cst_29 {dimension_numbers = #tpu.dot_dimension_numbers<[1], [0], [0], [1], [0, 0, 1, 1], [], []>} : vector<8x32xbf16>, vector<32x32xbf16>, vector<8x32xf32> -> vector<8x32xf32>
    %81 = vector.broadcast %32 : vector<1x32xf32> to vector<8x32xf32>
    %82 = arith.addf %80, %81 : vector<8x32xf32>
    %83 = arith.addf %28, %82 : vector<8x32xf32>
    %cst_30 = arith.constant dense<0.000000e+00> : vector<8xf32>
    %84 = vector.multi_reduction <add>, %83, %cst_30 [1] : vector<8x32xf32> to vector<8xf32>
    %85 = vector.shape_cast %84 : vector<8xf32> to vector<8x1xf32>
    %cst_31 = arith.constant 3.200000e+01 : f32
    %86 = vector.broadcast %cst_31 : f32 to vector<8x1xf32>
    %87 = arith.divf %85, %86 : vector<8x1xf32>
    %88 = vector.broadcast %87 : vector<8x1xf32> to vector<8x32xf32>
    %89 = arith.subf %83, %88 : vector<8x32xf32>
    %90 = arith.mulf %89, %89 : vector<8x32xf32>
    %cst_32 = arith.constant dense<0.000000e+00> : vector<8xf32>
    %91 = vector.multi_reduction <add>, %90, %cst_32 [1] : vector<8x32xf32> to vector<8xf32>
    %92 = vector.shape_cast %91 : vector<8xf32> to vector<8x1xf32>
    %cst_33 = arith.constant 3.200000e+01 : f32
    %93 = vector.broadcast %cst_33 : f32 to vector<8x1xf32>
    %94 = arith.divf %92, %93 : vector<8x1xf32>
    %cst_34 = arith.constant 9.99999996E-13 : f32
    %95 = vector.broadcast %cst_34 : f32 to vector<8x1xf32>
    %96 = arith.addf %94, %95 : vector<8x1xf32>
    %97 = math.rsqrt %96 : vector<8x1xf32>
    %98 = vector.broadcast %87 : vector<8x1xf32> to vector<8x32xf32>
    %99 = arith.subf %83, %98 : vector<8x32xf32>
    %100 = vector.broadcast %97 : vector<8x1xf32> to vector<8x32xf32>
    %101 = arith.mulf %99, %100 : vector<8x32xf32>
    %102 = vector.broadcast %33 : vector<1x32xf32> to vector<8x32xf32>
    %103 = arith.mulf %101, %102 : vector<8x32xf32>
    %104 = vector.broadcast %34 : vector<1x32xf32> to vector<8x32xf32>
    %105 = arith.addf %103, %104 : vector<8x32xf32>
    %106 = arith.truncf %105 : vector<8x32xf32> to vector<8x32xbf16>
    %c0_35 = arith.constant 0 : index
    %c0_36 = arith.constant 0 : index
    %c0_37 = arith.constant 0 : index
    %107 = vector.load %arg8[%c0_35, %c0_36, %c0_37] : memref<2x32x64xbf16, #tpu.memory_space<vmem>>, vector<1x32x64xbf16>
    %108 = vector.shape_cast %107 : vector<1x32x64xbf16> to vector<32x64xbf16>
    %cst_38 = arith.constant dense<0.000000e+00> : vector<8x64xf32>
    %109 = tpu.matmul %106, %108, %cst_38 {dimension_numbers = #tpu.dot_dimension_numbers<[1], [0], [0], [1], [0, 0, 1, 1], [], []>} : vector<8x32xbf16>, vector<32x64xbf16>, vector<8x64xf32> -> vector<8x64xf32>
    %110 = vector.broadcast %38 : vector<1x64xf32> to vector<8x64xf32>
    %111 = arith.addf %109, %110 : vector<8x64xf32>
    %112 = arith.mulf %111, %111 : vector<8x64xf32>
    %113 = arith.mulf %111, %112 : vector<8x64xf32>
    %cst_39 = arith.constant 4.471500e-02 : f32
    %114 = vector.broadcast %cst_39 : f32 to vector<8x64xf32>
    %115 = arith.mulf %114, %113 : vector<8x64xf32>
    %116 = arith.addf %111, %115 : vector<8x64xf32>
    %cst_40 = arith.constant 0.797884583 : f32
    %117 = vector.broadcast %cst_40 : f32 to vector<8x64xf32>
    %118 = arith.mulf %117, %116 : vector<8x64xf32>
    %119 = math.tanh %118 : vector<8x64xf32>
    %cst_41 = arith.constant 1.000000e+00 : f32
    %120 = vector.broadcast %cst_41 : f32 to vector<8x64xf32>
    %121 = arith.addf %120, %119 : vector<8x64xf32>
    %cst_42 = arith.constant 5.000000e-01 : f32
    %122 = vector.broadcast %cst_42 : f32 to vector<8x64xf32>
    %123 = arith.mulf %122, %121 : vector<8x64xf32>
    %124 = arith.mulf %111, %123 : vector<8x64xf32>
    %125 = arith.truncf %124 : vector<8x64xf32> to vector<8x64xbf16>
    %c0_43 = arith.constant 0 : index
    %c0_44 = arith.constant 0 : index
    %c0_45 = arith.constant 0 : index
    %126 = vector.load %arg9[%c0_43, %c0_44, %c0_45] : memref<2x64x32xbf16, #tpu.memory_space<vmem>>, vector<1x64x32xbf16>
    %127 = vector.shape_cast %126 : vector<1x64x32xbf16> to vector<64x32xbf16>
    %cst_46 = arith.constant dense<0.000000e+00> : vector<8x32xf32>
    %128 = tpu.matmul %125, %127, %cst_46 {dimension_numbers = #tpu.dot_dimension_numbers<[1], [0], [0], [1], [0, 0, 1, 1], [], []>} : vector<8x64xbf16>, vector<64x32xbf16>, vector<8x32xf32> -> vector<8x32xf32>
    %129 = vector.broadcast %35 : vector<1x32xf32> to vector<8x32xf32>
    %130 = arith.addf %128, %129 : vector<8x32xf32>
    %131 = arith.addf %105, %130 : vector<8x32xf32>
    %cst_47 = arith.constant dense<0.000000e+00> : vector<8xf32>
    %132 = vector.multi_reduction <add>, %131, %cst_47 [1] : vector<8x32xf32> to vector<8xf32>
    %133 = vector.shape_cast %132 : vector<8xf32> to vector<8x1xf32>
    %cst_48 = arith.constant 3.200000e+01 : f32
    %134 = vector.broadcast %cst_48 : f32 to vector<8x1xf32>
    %135 = arith.divf %133, %134 : vector<8x1xf32>
    %136 = vector.broadcast %135 : vector<8x1xf32> to vector<8x32xf32>
    %137 = arith.subf %131, %136 : vector<8x32xf32>
    %138 = arith.mulf %137, %137 : vector<8x32xf32>
    %cst_49 = arith.constant dense<0.000000e+00> : vector<8xf32>
    %139 = vector.multi_reduction <add>, %138, %cst_49 [1] : vector<8x32xf32> to vector<8xf32>
    %140 = vector.shape_cast %139 : vector<8xf32> to vector<8x1xf32>
    %cst_50 = arith.constant 3.200000e+01 : f32
    %141 = vector.broadcast %cst_50 : f32 to vector<8x1xf32>
    %142 = arith.divf %140, %141 : vector<8x1xf32>
    %cst_51 = arith.constant 9.99999996E-13 : f32
    %143 = vector.broadcast %cst_51 : f32 to vector<8x1xf32>
    %144 = arith.addf %142, %143 : vector<8x1xf32>
    %145 = math.rsqrt %144 : vector<8x1xf32>
    %146 = vector.broadcast %135 : vector<8x1xf32> to vector<8x32xf32>
    %147 = arith.subf %131, %146 : vector<8x32xf32>
    %148 = vector.broadcast %145 : vector<8x1xf32> to vector<8x32xf32>
    %149 = arith.mulf %147, %148 : vector<8x32xf32>
    %150 = vector.broadcast %36 : vector<1x32xf32> to vector<8x32xf32>
    %151 = arith.mulf %149, %150 : vector<8x32xf32>
    %152 = vector.broadcast %37 : vector<1x32xf32> to vector<8x32xf32>
    %153 = arith.addf %151, %152 : vector<8x32xf32>
    %c1_52 = arith.constant 1 : index
    %c0_53 = arith.constant 0 : index
    %c0_54 = arith.constant 0 : index
    %154 = vector.load %arg10[%c1_52, %c0_53, %c0_54] : memref<2x4x96xf32, #tpu.memory_space<vmem>>, vector<1x4x96xf32>
    %155 = vector.shape_cast %154 : vector<1x4x96xf32> to vector<4x96xf32>
    %156 = vector.extract_strided_slice %155 {offsets = [0, 0], sizes = [1, 96], strides = [1, 1]} : vector<4x96xf32> to vector<1x96xf32>
    %157 = vector.extract_strided_slice %155 {offsets = [1, 0], sizes = [1, 32], strides = [1, 1]} : vector<4x96xf32> to vector<1x32xf32>
    %158 = vector.extract_strided_slice %155 {offsets = [1, 32], sizes = [1, 32], strides = [1, 1]} : vector<4x96xf32> to vector<1x32xf32>
    %159 = vector.extract_strided_slice %155 {offsets = [1, 64], sizes = [1, 32], strides = [1, 1]} : vector<4x96xf32> to vector<1x32xf32>
    %160 = vector.extract_strided_slice %155 {offsets = [2, 0], sizes = [1, 32], strides = [1, 1]} : vector<4x96xf32> to vector<1x32xf32>
    %161 = vector.extract_strided_slice %155 {offsets = [2, 32], sizes = [1, 32], strides = [1, 1]} : vector<4x96xf32> to vector<1x32xf32>
    %162 = vector.extract_strided_slice %155 {offsets = [2, 64], sizes = [1, 32], strides = [1, 1]} : vector<4x96xf32> to vector<1x32xf32>
    %163 = vector.extract_strided_slice %155 {offsets = [3, 0], sizes = [1, 64], strides = [1, 1]} : vector<4x96xf32> to vector<1x64xf32>
    %164 = arith.truncf %153 : vector<8x32xf32> to vector<8x32xbf16>
    %c1_55 = arith.constant 1 : index
    %c0_56 = arith.constant 0 : index
    %c0_57 = arith.constant 0 : index
    %165 = vector.load %arg6[%c1_55, %c0_56, %c0_57] : memref<2x32x96xbf16, #tpu.memory_space<vmem>>, vector<1x32x96xbf16>
    %166 = vector.shape_cast %165 : vector<1x32x96xbf16> to vector<32x96xbf16>
    %cst_58 = arith.constant dense<0.000000e+00> : vector<8x96xf32>
    %167 = tpu.matmul %164, %166, %cst_58 {dimension_numbers = #tpu.dot_dimension_numbers<[1], [0], [0], [1], [0, 0, 1, 1], [], []>} : vector<8x32xbf16>, vector<32x96xbf16>, vector<8x96xf32> -> vector<8x96xf32>
    %168 = vector.broadcast %156 : vector<1x96xf32> to vector<8x96xf32>
    %169 = arith.addf %167, %168 : vector<8x96xf32>
    %170 = vector.extract_strided_slice %169 {offsets = [0, 0], sizes = [8, 32], strides = [1, 1]} : vector<8x96xf32> to vector<8x32xf32>
    %cst_59 = arith.constant 0.353553385 : f32
    %171 = vector.broadcast %cst_59 : f32 to vector<8x32xf32>
    %172 = arith.mulf %170, %171 : vector<8x32xf32>
    %173 = vector.extract_strided_slice %169 {offsets = [0, 32], sizes = [8, 32], strides = [1, 1]} : vector<8x96xf32> to vector<8x32xf32>
    %174 = vector.extract_strided_slice %169 {offsets = [0, 64], sizes = [8, 32], strides = [1, 1]} : vector<8x96xf32> to vector<8x32xf32>
    %175 = tpu.concatenate %172, %172, %172, %172 in 0 : vector<8x32xf32>, vector<8x32xf32>, vector<8x32xf32>, vector<8x32xf32> -> vector<32x32xf32>
    %176 = arith.mulf %175, %0 : vector<32x32xf32>
    %177 = arith.truncf %176 : vector<32x32xf32> to vector<32x32xbf16>
    %178 = arith.truncf %173 : vector<8x32xf32> to vector<8x32xbf16>
    %cst_60 = arith.constant dense<0.000000e+00> : vector<32x8xf32>
    %179 = tpu.matmul %177, %178, %cst_60 {dimension_numbers = #tpu.dot_dimension_numbers<[1], [1], [0], [0], [0, 0, 1, 0], [], []>} : vector<32x32xbf16>, vector<8x32xbf16>, vector<32x8xf32> -> vector<32x8xf32>
    %180 = vector.broadcast %2 : vector<1x8xf32> to vector<32x8xf32>
    %181 = arith.addf %179, %180 : vector<32x8xf32>
    %cst_61 = arith.constant dense<0xFF800000> : vector<32xf32>
    %182 = vector.multi_reduction <maximumf>, %181, %cst_61 [1] : vector<32x8xf32> to vector<32xf32>
    %183 = vector.shape_cast %182 : vector<32xf32> to vector<32x1xf32>
    %184 = vector.broadcast %183 : vector<32x1xf32> to vector<32x8xf32>
    %185 = arith.subf %181, %184 : vector<32x8xf32>
    %186 = math.exp %185 : vector<32x8xf32>
    %cst_62 = arith.constant dense<0.000000e+00> : vector<32xf32>
    %187 = vector.multi_reduction <add>, %186, %cst_62 [1] : vector<32x8xf32> to vector<32xf32>
    %188 = vector.shape_cast %187 : vector<32xf32> to vector<32x1xf32>
    %189 = vector.broadcast %188 : vector<32x1xf32> to vector<32x8xf32>
    %190 = arith.divf %186, %189 : vector<32x8xf32>
    %191 = arith.truncf %190 : vector<32x8xf32> to vector<32x8xbf16>
    %192 = arith.truncf %174 : vector<8x32xf32> to vector<8x32xbf16>
    %cst_63 = arith.constant dense<0.000000e+00> : vector<32x32xf32>
    %193 = tpu.matmul %191, %192, %cst_63 {dimension_numbers = #tpu.dot_dimension_numbers<[1], [0], [0], [1], [0, 0, 1, 1], [], []>} : vector<32x8xbf16>, vector<8x32xbf16>, vector<32x32xf32> -> vector<32x32xf32>
    %194 = arith.mulf %193, %0 : vector<32x32xf32>
    %195 = vector.extract_strided_slice %194 {offsets = [0, 0], sizes = [8, 32], strides = [1, 1]} : vector<32x32xf32> to vector<8x32xf32>
    %196 = vector.extract_strided_slice %194 {offsets = [8, 0], sizes = [8, 32], strides = [1, 1]} : vector<32x32xf32> to vector<8x32xf32>
    %197 = arith.addf %195, %196 : vector<8x32xf32>
    %198 = vector.extract_strided_slice %194 {offsets = [16, 0], sizes = [8, 32], strides = [1, 1]} : vector<32x32xf32> to vector<8x32xf32>
    %199 = arith.addf %197, %198 : vector<8x32xf32>
    %200 = vector.extract_strided_slice %194 {offsets = [24, 0], sizes = [8, 32], strides = [1, 1]} : vector<32x32xf32> to vector<8x32xf32>
    %201 = arith.addf %199, %200 : vector<8x32xf32>
    %202 = arith.truncf %201 : vector<8x32xf32> to vector<8x32xbf16>
    %c1_64 = arith.constant 1 : index
    %c0_65 = arith.constant 0 : index
    %c0_66 = arith.constant 0 : index
    %203 = vector.load %arg7[%c1_64, %c0_65, %c0_66] : memref<2x32x32xbf16, #tpu.memory_space<vmem>>, vector<1x32x32xbf16>
    %204 = vector.shape_cast %203 : vector<1x32x32xbf16> to vector<32x32xbf16>
    %cst_67 = arith.constant dense<0.000000e+00> : vector<8x32xf32>
    %205 = tpu.matmul %202, %204, %cst_67 {dimension_numbers = #tpu.dot_dimension_numbers<[1], [0], [0], [1], [0, 0, 1, 1], [], []>} : vector<8x32xbf16>, vector<32x32xbf16>, vector<8x32xf32> -> vector<8x32xf32>
    %206 = vector.broadcast %157 : vector<1x32xf32> to vector<8x32xf32>
    %207 = arith.addf %205, %206 : vector<8x32xf32>
    %208 = arith.addf %153, %207 : vector<8x32xf32>
    %cst_68 = arith.constant dense<0.000000e+00> : vector<8xf32>
    %209 = vector.multi_reduction <add>, %208, %cst_68 [1] : vector<8x32xf32> to vector<8xf32>
    %210 = vector.shape_cast %209 : vector<8xf32> to vector<8x1xf32>
    %cst_69 = arith.constant 3.200000e+01 : f32
    %211 = vector.broadcast %cst_69 : f32 to vector<8x1xf32>
    %212 = arith.divf %210, %211 : vector<8x1xf32>
    %213 = vector.broadcast %212 : vector<8x1xf32> to vector<8x32xf32>
    %214 = arith.subf %208, %213 : vector<8x32xf32>
    %215 = arith.mulf %214, %214 : vector<8x32xf32>
    %cst_70 = arith.constant dense<0.000000e+00> : vector<8xf32>
    %216 = vector.multi_reduction <add>, %215, %cst_70 [1] : vector<8x32xf32> to vector<8xf32>
    %217 = vector.shape_cast %216 : vector<8xf32> to vector<8x1xf32>
    %cst_71 = arith.constant 3.200000e+01 : f32
    %218 = vector.broadcast %cst_71 : f32 to vector<8x1xf32>
    %219 = arith.divf %217, %218 : vector<8x1xf32>
    %cst_72 = arith.constant 9.99999996E-13 : f32
    %220 = vector.broadcast %cst_72 : f32 to vector<8x1xf32>
    %221 = arith.addf %219, %220 : vector<8x1xf32>
    %222 = math.rsqrt %221 : vector<8x1xf32>
    %223 = vector.broadcast %212 : vector<8x1xf32> to vector<8x32xf32>
    %224 = arith.subf %208, %223 : vector<8x32xf32>
    %225 = vector.broadcast %222 : vector<8x1xf32> to vector<8x32xf32>
    %226 = arith.mulf %224, %225 : vector<8x32xf32>
    %227 = vector.broadcast %158 : vector<1x32xf32> to vector<8x32xf32>
    %228 = arith.mulf %226, %227 : vector<8x32xf32>
    %229 = vector.broadcast %159 : vector<1x32xf32> to vector<8x32xf32>
    %230 = arith.addf %228, %229 : vector<8x32xf32>
    %231 = arith.truncf %230 : vector<8x32xf32> to vector<8x32xbf16>
    %c1_73 = arith.constant 1 : index
    %c0_74 = arith.constant 0 : index
    %c0_75 = arith.constant 0 : index
    %232 = vector.load %arg8[%c1_73, %c0_74, %c0_75] : memref<2x32x64xbf16, #tpu.memory_space<vmem>>, vector<1x32x64xbf16>
    %233 = vector.shape_cast %232 : vector<1x32x64xbf16> to vector<32x64xbf16>
    %cst_76 = arith.constant dense<0.000000e+00> : vector<8x64xf32>
    %234 = tpu.matmul %231, %233, %cst_76 {dimension_numbers = #tpu.dot_dimension_numbers<[1], [0], [0], [1], [0, 0, 1, 1], [], []>} : vector<8x32xbf16>, vector<32x64xbf16>, vector<8x64xf32> -> vector<8x64xf32>
    %235 = vector.broadcast %163 : vector<1x64xf32> to vector<8x64xf32>
    %236 = arith.addf %234, %235 : vector<8x64xf32>
    %237 = arith.mulf %236, %236 : vector<8x64xf32>
    %238 = arith.mulf %236, %237 : vector<8x64xf32>
    %cst_77 = arith.constant 4.471500e-02 : f32
    %239 = vector.broadcast %cst_77 : f32 to vector<8x64xf32>
    %240 = arith.mulf %239, %238 : vector<8x64xf32>
    %241 = arith.addf %236, %240 : vector<8x64xf32>
    %cst_78 = arith.constant 0.797884583 : f32
    %242 = vector.broadcast %cst_78 : f32 to vector<8x64xf32>
    %243 = arith.mulf %242, %241 : vector<8x64xf32>
    %244 = math.tanh %243 : vector<8x64xf32>
    %cst_79 = arith.constant 1.000000e+00 : f32
    %245 = vector.broadcast %cst_79 : f32 to vector<8x64xf32>
    %246 = arith.addf %245, %244 : vector<8x64xf32>
    %cst_80 = arith.constant 5.000000e-01 : f32
    %247 = vector.broadcast %cst_80 : f32 to vector<8x64xf32>
    %248 = arith.mulf %247, %246 : vector<8x64xf32>
    %249 = arith.mulf %236, %248 : vector<8x64xf32>
    %250 = arith.truncf %249 : vector<8x64xf32> to vector<8x64xbf16>
    %c1_81 = arith.constant 1 : index
    %c0_82 = arith.constant 0 : index
    %c0_83 = arith.constant 0 : index
    %251 = vector.load %arg9[%c1_81, %c0_82, %c0_83] : memref<2x64x32xbf16, #tpu.memory_space<vmem>>, vector<1x64x32xbf16>
    %252 = vector.shape_cast %251 : vector<1x64x32xbf16> to vector<64x32xbf16>
    %cst_84 = arith.constant dense<0.000000e+00> : vector<8x32xf32>
    %253 = tpu.matmul %250, %252, %cst_84 {dimension_numbers = #tpu.dot_dimension_numbers<[1], [0], [0], [1], [0, 0, 1, 1], [], []>} : vector<8x64xbf16>, vector<64x32xbf16>, vector<8x32xf32> -> vector<8x32xf32>
    %254 = vector.broadcast %160 : vector<1x32xf32> to vector<8x32xf32>
    %255 = arith.addf %253, %254 : vector<8x32xf32>
    %256 = arith.addf %230, %255 : vector<8x32xf32>
    %cst_85 = arith.constant dense<0.000000e+00> : vector<8xf32>
    %257 = vector.multi_reduction <add>, %256, %cst_85 [1] : vector<8x32xf32> to vector<8xf32>
    %258 = vector.shape_cast %257 : vector<8xf32> to vector<8x1xf32>
    %cst_86 = arith.constant 3.200000e+01 : f32
    %259 = vector.broadcast %cst_86 : f32 to vector<8x1xf32>
    %260 = arith.divf %258, %259 : vector<8x1xf32>
    %261 = vector.broadcast %260 : vector<8x1xf32> to vector<8x32xf32>
    %262 = arith.subf %256, %261 : vector<8x32xf32>
    %263 = arith.mulf %262, %262 : vector<8x32xf32>
    %cst_87 = arith.constant dense<0.000000e+00> : vector<8xf32>
    %264 = vector.multi_reduction <add>, %263, %cst_87 [1] : vector<8x32xf32> to vector<8xf32>
    %265 = vector.shape_cast %264 : vector<8xf32> to vector<8x1xf32>
    %cst_88 = arith.constant 3.200000e+01 : f32
    %266 = vector.broadcast %cst_88 : f32 to vector<8x1xf32>
    %267 = arith.divf %265, %266 : vector<8x1xf32>
    %cst_89 = arith.constant 9.99999996E-13 : f32
    %268 = vector.broadcast %cst_89 : f32 to vector<8x1xf32>
    %269 = arith.addf %267, %268 : vector<8x1xf32>
    %270 = math.rsqrt %269 : vector<8x1xf32>
    %271 = vector.broadcast %260 : vector<8x1xf32> to vector<8x32xf32>
    %272 = arith.subf %256, %271 : vector<8x32xf32>
    %273 = vector.broadcast %270 : vector<8x1xf32> to vector<8x32xf32>
    %274 = arith.mulf %272, %273 : vector<8x32xf32>
    %275 = vector.broadcast %161 : vector<1x32xf32> to vector<8x32xf32>
    %276 = arith.mulf %274, %275 : vector<8x32xf32>
    %277 = vector.broadcast %162 : vector<1x32xf32> to vector<8x32xf32>
    %278 = arith.addf %276, %277 : vector<8x32xf32>
    %c0_90 = arith.constant 0 : index
    %c0_91 = arith.constant 0 : index
    %279 = vector.load %arg12[%c0_90, %c0_91] : memref<8x32xf32, #tpu.memory_space<vmem>>, vector<8x32xf32>
    tpu.vector_store %arg12[%c0_90, %c0_91], %278 {strides = array<i32>} : memref<8x32xf32, #tpu.memory_space<vmem>>, vector<8x32xf32>,
    %280 = arith.index_cast %arg0 : i32 to index
    %c0_92 = arith.constant 0 : index
    %281 = memref.load %arg1[%280, %c0_92] : memref<2x5xi32, #tpu.memory_space<smem>>
    %282 = arith.index_cast %281 : i32 to index
    %c0_93 = arith.constant 0 : index
    %283 = vector.load %arg12[%282, %c0_93] : memref<8x32xf32, #tpu.memory_space<vmem>>, vector<1x32xf32>
    %284 = arith.index_cast %arg0 : i32 to index
    %c1_94 = arith.constant 1 : index
    %285 = memref.load %arg1[%284, %c1_94] : memref<2x5xi32, #tpu.memory_space<smem>>
    %286 = arith.index_cast %285 : i32 to index
    %c0_95 = arith.constant 0 : index
    %287 = vector.load %arg12[%286, %c0_95] : memref<8x32xf32, #tpu.memory_space<vmem>>, vector<1x32xf32>
    %288 = arith.index_cast %arg0 : i32 to index
    %c2 = arith.constant 2 : index
    %289 = memref.load %arg1[%288, %c2] : memref<2x5xi32, #tpu.memory_space<smem>>
    %290 = arith.index_cast %289 : i32 to index
    %c0_96 = arith.constant 0 : index
    %291 = vector.load %arg12[%290, %c0_96] : memref<8x32xf32, #tpu.memory_space<vmem>>, vector<1x32xf32>
    %292 = arith.index_cast %arg0 : i32 to index
    %c3 = arith.constant 3 : index
    %293 = memref.load %arg1[%292, %c3] : memref<2x5xi32, #tpu.memory_space<smem>>
    %294 = arith.index_cast %293 : i32 to index
    %c0_97 = arith.constant 0 : index
    %295 = vector.load %arg12[%294, %c0_97] : memref<8x32xf32, #tpu.memory_space<vmem>>, vector<1x32xf32>
    %296 = arith.index_cast %arg0 : i32 to index
    %c4 = arith.constant 4 : index
    %297 = memref.load %arg1[%296, %c4] : memref<2x5xi32, #tpu.memory_space<smem>>
    %298 = arith.index_cast %297 : i32 to index
    %c0_98 = arith.constant 0 : index
    %299 = vector.load %arg12[%298, %c0_98] : memref<8x32xf32, #tpu.memory_space<vmem>>, vector<1x32xf32>
    %300 = tpu.concatenate %283, %287, %291, %295, %299 in 0 : vector<1x32xf32>, vector<1x32xf32>, vector<1x32xf32>, vector<1x32xf32>, vector<1x32xf32> -> vector<5x32xf32>
    %c0_99 = arith.constant 0 : index
    %c0_100 = arith.constant 0 : index
    %c0_101 = arith.constant 0 : index
    %301 = vector.load %arg11[%c0_99, %c0_100, %c0_101] : memref<1x5x32xf32, #tpu.memory_space<vmem>>, vector<1x5x32xf32>
    %302 = vector.shape_cast %301 : vector<1x5x32xf32> to vector<5x32xf32>
    %303 = vector.shape_cast %300 : vector<5x32xf32> to vector<1x5x32xf32>
    tpu.vector_store %arg11[%c0_99, %c0_100, %c0_101], %303 {strides = array<i32>} : memref<1x5x32xf32, #tpu.memory_space<vmem>>, vector<1x5x32xf32>,
    return
  }
  func.func @transform_0(%arg0: i32, %arg1: memref<2x5xi32, #tpu.memory_space<smem>>) -> (i32, i32, i32) {
    %c0_i32 = arith.constant 0 : i32
    %c0_i32_0 = arith.constant 0 : i32
    %c0_i32_1 = arith.constant 0 : i32
    return %arg0, %c0_i32, %c0_i32_0 : i32, i32, i32
  }
  func.func @transform_1(%arg0: i32, %arg1: memref<2x5xi32, #tpu.memory_space<smem>>) -> (i32, i32, i32) {
    %c0_i32 = arith.constant 0 : i32
    %c0_i32_0 = arith.constant 0 : i32
    %c0_i32_1 = arith.constant 0 : i32
    return %arg0, %c0_i32, %c0_i32_0 : i32, i32, i32
  }
  func.func @transform_2(%arg0: i32, %arg1: memref<2x5xi32, #tpu.memory_space<smem>>) -> (i32, i32) {
    %c0_i32 = arith.constant 0 : i32
    %c0_i32_0 = arith.constant 0 : i32
    %c0_i32_1 = arith.constant 0 : i32
    return %c0_i32, %c0_i32_0 : i32, i32
  }
  func.func @transform_3(%arg0: i32, %arg1: memref<2x5xi32, #tpu.memory_space<smem>>) -> (i32, i32) {
    %c0_i32 = arith.constant 0 : i32
    %c0_i32_0 = arith.constant 0 : i32
    %c0_i32_1 = arith.constant 0 : i32
    return %c0_i32, %c0_i32_0 : i32, i32
  }
  func.func @transform_4(%arg0: i32, %arg1: memref<2x5xi32, #tpu.memory_space<smem>>) -> (i32, i32, i32) {
    %c0_i32 = arith.constant 0 : i32
    %c0_i32_0 = arith.constant 0 : i32
    %c0_i32_1 = arith.constant 0 : i32
    %c0_i32_2 = arith.constant 0 : i32
    return %c0_i32, %c0_i32_0, %c0_i32_1 : i32, i32, i32
  }
  func.func @transform_5(%arg0: i32, %arg1: memref<2x5xi32, #tpu.memory_space<smem>>) -> (i32, i32, i32) {
    %c0_i32 = arith.constant 0 : i32
    %c0_i32_0 = arith.constant 0 : i32
    %c0_i32_1 = arith.constant 0 : i32
    %c0_i32_2 = arith.constant 0 : i32
    return %c0_i32, %c0_i32_0, %c0_i32_1 : i32, i32, i32
  }
  func.func @transform_6(%arg0: i32, %arg1: memref<2x5xi32, #tpu.memory_space<smem>>) -> (i32, i32, i32) {
    %c0_i32 = arith.constant 0 : i32
    %c0_i32_0 = arith.constant 0 : i32
    %c0_i32_1 = arith.constant 0 : i32
    %c0_i32_2 = arith.constant 0 : i32
    return %c0_i32, %c0_i32_0, %c0_i32_1 : i32, i32, i32
  }
  func.func @transform_7(%arg0: i32, %arg1: memref<2x5xi32, #tpu.memory_space<smem>>) -> (i32, i32, i32) {
    %c0_i32 = arith.constant 0 : i32
    %c0_i32_0 = arith.constant 0 : i32
    %c0_i32_1 = arith.constant 0 : i32
    %c0_i32_2 = arith.constant 0 : i32
    return %c0_i32, %c0_i32_0, %c0_i32_1 : i32, i32, i32
  }
  func.func @transform_8(%arg0: i32, %arg1: memref<2x5xi32, #tpu.memory_space<smem>>) -> (i32, i32, i32) {
    %c0_i32 = arith.constant 0 : i32
    %c0_i32_0 = arith.constant 0 : i32
    %c0_i32_1 = arith.constant 0 : i32
    %c0_i32_2 = arith.constant 0 : i32
    return %c0_i32, %c0_i32_0, %c0_i32_1 : i32, i32, i32
  }
  func.func @transform_9(%arg0: i32, %arg1: memref<2x5xi32, #tpu.memory_space<smem>>) -> (i32, i32, i32) {
    %c0_i32 = arith.constant 0 : i32
    %c0_i32_0 = arith.constant 0 : i32
    %c0_i32_1 = arith.constant 0 : i32
    return %arg0, %c0_i32, %c0_i32_0 : i32, i32, i32
  }
}

</mosaic_0001>

<llo_original>
// kernel: tpu_custom_call.1
$region0: #{tpu_custom_call.1}
  #allocation0 [shape = 'u32[]', space=smem, size = 0x4, offset = 0x4, fixed_abs, tag = 'smem constant byte address 0x4 - core index']
  #allocation1 [shape = 'u32[144,128]{1,0:T(1,128)}', space=vmem, size = 0x12000, scoped, tag = 'internal scratch']
  #allocation2 [shape = 'f32[8,32]{1,0:T(8,128)}', space=vmem, size = 0x1000, scoped, tag = 'scratch operand']
  #allocation3 [shape = 's32[1]{0}', space=sflag, size = 0x4, scoped, tag = 'scoped memory for tpu_custom_call.1']
  #allocation4 [shape = 'u8[1024]{0}', space=smem, size = 0x400, scoped, tag = 'prefetched SMEM operand 0']
  %s0 = inlined_call_operand.hbm [shape: s32[2,5], index: 0, kind: input, shape index: {}]
  %s1 = inlined_call_operand.hbm [shape: f32[2,8,32], index: 1, kind: input, shape index: {}]
  %s2 = inlined_call_operand.hbm [shape: f32[2,1,8], index: 2, kind: input, shape index: {}]
  %s3 = inlined_call_operand.hbm [shape: f32[2,32], index: 3, kind: input, shape index: {}]
  %s4 = inlined_call_operand.vmem [shape: f32[32,32], index: 4, kind: input, shape index: {}]
  %s5 = inlined_call_operand.vmem [shape: bf16[2,32,96], index: 5, kind: input, shape index: {}]
  %s6 = inlined_call_operand.vmem [shape: bf16[2,32,32], index: 6, kind: input, shape index: {}]
  %s7 = inlined_call_operand.hbm [shape: bf16[2,32,64], index: 7, kind: input, shape index: {}]
  %s8 = inlined_call_operand.vmem [shape: bf16[2,64,32], index: 8, kind: input, shape index: {}]
  %s9 = inlined_call_operand.vmem [shape: f32[2,4,96], index: 9, kind: input, shape index: {}]
  %s10 = inlined_call_operand.vmem [shape: f32[2,5,32], index: 10, kind: output, shape index: {}]
  %s11 = sld [smem:[#allocation0]]
  $region85: #{tpu_custom_call.1} parent=0
    _
  %s13 = ssub.s32 1, %s11
  %s14 = scalar_select 0, %s13, %s11
  %16 = dma.hbm_to_smem %s0, 32, [#allocation4], [#allocation3]
  %17 = dma.done [#allocation3], 32
  %18 = sfence
  $region1: #{tpu_custom_call.1} parent=0
    #allocation5 [shape = 'u8[8192]{0}', space=vmem, size = 0x2000, scoped, tag = 'input window, operand 1']
    #allocation6 [shape = 's32[2]{0}', space=sflag, size = 0x8, scoped, tag = 'scoped memory for tpu_custom_call.1']
    #allocation7 [shape = 'u8[1024]{0}', space=vmem, size = 0x400, scoped, tag = 'input window, operand 2']
    #allocation8 [shape = 's32[2]{0}', space=sflag, size = 0x8, scoped, tag = 'scoped memory for tpu_custom_call.1']
    #allocation9 [shape = 'u8[1024]{0}', space=vmem, size = 0x400, scoped, tag = 'input window, operand 3, single buffered']
    #allocation10 [shape = 'u8[16384]{0}', space=vmem, size = 0x4000, scoped, tag = 'input window, operand 7, single buffered']
    #allocation11 [shape = 's32[1]{0}', space=sflag, size = 0x4, scoped, tag = 'scoped memory for tpu_custom_call.1']
    %19 = vsyncpa [#allocation6], 0
    %s20 = scalar_lea.sflag [#allocation6], 1
    %21 = vsyncpa %s20, 0
    %22 = vsyncpa [#allocation8], 0
    %s23 = scalar_lea.sflag [#allocation8], 1
    %24 = vsyncpa %s23, 0
    %25 = vsyncpa [#allocation11], 0
    loop: start=0, step=1, limit=4
    $region2: #{tpu_custom_call.1} parent=1 // loop_pre_header
      _
    $region3: #{tpu_custom_call.1} parent=1 // loop_header
      %s27 = sphi 0, %s31
      %p28 = scmp.ge.s32.totalorder %s27, 4
      %s37 = sphi 0, %s39
      %s40 = sphi 0, %s37
      %s41 = sphi 0, %s40
      %s57 = sphi 0, %s41
      %s63 = sphi 0, %s65
      %s66 = sphi 0, %s63
      %s67 = sphi 0, %s66
      %s83 = sphi 0, %s67
      %s87 = sphi 0, %s87
      %s89 = sphi 0, %s87
      %s90 = sphi 0, %s89
      %s104 = sphi 0, %s90
      %s108 = sphi 0, %s108
      %s110 = sphi 0, %s108
      %s111 = sphi 0, %s110
      %s125 = sphi 0, %s111
      %s129 = sphi 0, %s129
      %s131 = sphi 0, %s129
      %s132 = sphi 0, %s131
      %s146 = sphi 0, %s132
      %s150 = sphi 0, %s150
      %s152 = sphi 0, %s150
      %s153 = sphi 0, %s152
      %s167 = sphi 0, %s153
      %s171 = sphi 0, %s171
      %s173 = sphi 0, %s171
      %s174 = sphi 0, %s173
      %s188 = sphi 0, %s174
      %s192 = sphi 0, %s192
      %s194 = sphi 0, %s192
      %s195 = sphi 0, %s194
      %s209 = sphi 0, %s195
      %s213 = sphi 0, %s213
      %s215 = sphi 0, %s213
      %s216 = sphi 0, %s215
      %s230 = sphi 0, %s216
      %s236 = sphi 0, %s238
      %s239 = sphi 0, %s236
      %s240 = sphi 0, %s239
      %s256 = sphi 0, %s240
    $region4: #{tpu_custom_call.1} parent=1 // loop_header_branch
      %30 = sbr.rel (%p28) target = $region8
    $region5: #{tpu_custom_call.1} parent=1 // loop_body
      %s32 = ssub.s32 %s27, 1
      %s33 = ssub.s32 %s27, 2
      %s34 = sadd.s32 %s27, 1
      %s35 = ssub.s32 %s27, %s34
      %p36 = scmp.eq.s32.totalorder %s35, 0
      %s38 = sadd.s32 %s37, 1
      %s39 = scalar_select %p36, %s37, %s38
      %p42 = pneg %p36
      %p43 = scmp.eq.s32.totalorder %s27, 1
      %p44 = por %p42, %p43
      %p45 = scmp.ne.s32.totalorder %s37, %s40
      %p46 = scmp.eq.s32.totalorder %s27, 0
      %p47 = por %p45, %p46
      %p48 = scmp.ne.s32.totalorder %s37, %s40
      %p49 = scmp.eq.s32.totalorder %s32, 1
      %p50 = por %p48, %p49
      %p51 = scmp.ne.s32.totalorder %s40, %s41
      %p52 = scmp.eq.s32.totalorder %s32, 0
      %p53 = por %p51, %p52
      %p54 = scmp.ne.s32.totalorder %s40, %s41
      %p55 = scmp.eq.s32.totalorder %s33, 1
      %p56 = por %p54, %p55
      %p58 = scmp.ne.s32.totalorder %s41, %s57
      %p59 = scmp.eq.s32.totalorder %s33, 0
      %p60 = por %p58, %p59
      %s61 = ssub.s32 %s27, %s34
      %p62 = scmp.eq.s32.totalorder %s61, 0
      %s64 = sadd.s32 %s63, 1
      %s65 = scalar_select %p62, %s63, %s64
      %p68 = pneg %p62
      %p69 = scmp.eq.s32.totalorder %s27, 1
      %p70 = por %p68, %p69
      %p71 = scmp.ne.s32.totalorder %s63, %s66
      %p72 = scmp.eq.s32.totalorder %s27, 0
      %p73 = por %p71, %p72
      %p74 = scmp.ne.s32.totalorder %s63, %s66
      %p75 = scmp.eq.s32.totalorder %s32, 1
      %p76 = por %p74, %p75
      %p77 = scmp.ne.s32.totalorder %s66, %s67
      %p78 = scmp.eq.s32.totalorder %s32, 0
      %p79 = por %p77, %p78
      %p80 = scmp.ne.s32.totalorder %s66, %s67
      %p81 = scmp.eq.s32.totalorder %s33, 1
      %p82 = por %p80, %p81
      %p84 = scmp.ne.s32.totalorder %s67, %s83
      %p85 = scmp.eq.s32.totalorder %s33, 0
      %p86 = por %p84, %p85
      %s88 = sadd.s32 %s87, 1
      %p91 = scmp.eq.s32.totalorder %s27, 1
      %p92 = scmp.ne.s32.totalorder %s87, %s89
      %p93 = scmp.eq.s32.totalorder %s27, 0
      %p94 = por %p92, %p93
      %p95 = scmp.ne.s32.totalorder %s87, %s89
      %p96 = scmp.eq.s32.totalorder %s32, 1
      %p97 = por %p95, %p96
      %p98 = scmp.ne.s32.totalorder %s89, %s90
      %p99 = scmp.eq.s32.totalorder %s32, 0
      %p100 = por %p98, %p99
      %p101 = scmp.ne.s32.totalorder %s89, %s90
      %p102 = scmp.eq.s32.totalorder %s33, 1
      %p103 = por %p101, %p102
      %p105 = scmp.ne.s32.totalorder %s90, %s104
      %p106 = scmp.eq.s32.totalorder %s33, 0
      %p107 = por %p105, %p106
      %s109 = sadd.s32 %s108, 1
      %p112 = scmp.eq.s32.totalorder %s27, 1
      %p113 = scmp.ne.s32.totalorder %s108, %s110
      %p114 = scmp.eq.s32.totalorder %s27, 0
      %p115 = por %p113, %p114
      %p116 = scmp.ne.s32.totalorder %s108, %s110
      %p117 = scmp.eq.s32.totalorder %s32, 1
      %p118 = por %p116, %p117
      %p119 = scmp.ne.s32.totalorder %s110, %s111
      %p120 = scmp.eq.s32.totalorder %s32, 0
      %p121 = por %p119, %p120
      %p122 = scmp.ne.s32.totalorder %s110, %s111
      %p123 = scmp.eq.s32.totalorder %s33, 1
      %p124 = por %p122, %p123
      %p126 = scmp.ne.s32.totalorder %s111, %s125
      %p127 = scmp.eq.s32.totalorder %s33, 0
      %p128 = por %p126, %p127
      %s130 = sadd.s32 %s129, 1
      %p133 = scmp.eq.s32.totalorder %s27, 1
      %p134 = scmp.ne.s32.totalorder %s129, %s131
      %p135 = scmp.eq.s32.totalorder %s27, 0
      %p136 = por %p134, %p135
      %p137 = scmp.ne.s32.totalorder %s129, %s131
      %p138 = scmp.eq.s32.totalorder %s32, 1
      %p139 = por %p137, %p138
      %p140 = scmp.ne.s32.totalorder %s131, %s132
      %p141 = scmp.eq.s32.totalorder %s32, 0
      %p142 = por %p140, %p141
      %p143 = scmp.ne.s32.totalorder %s131, %s132
      %p144 = scmp.eq.s32.totalorder %s33, 1
      %p145 = por %p143, %p144
      %p147 = scmp.ne.s32.totalorder %s132, %s146
      %p148 = scmp.eq.s32.totalorder %s33, 0
      %p149 = por %p147, %p148
      %s151 = sadd.s32 %s150, 1
      %p154 = scmp.eq.s32.totalorder %s27, 1
      %p155 = scmp.ne.s32.totalorder %s150, %s152
      %p156 = scmp.eq.s32.totalorder %s27, 0
      %p157 = por %p155, %p156
      %p158 = scmp.ne.s32.totalorder %s150, %s152
      %p159 = scmp.eq.s32.totalorder %s32, 1
      %p160 = por %p158, %p159
      %p161 = scmp.ne.s32.totalorder %s152, %s153
      %p162 = scmp.eq.s32.totalorder %s32, 0
      %p163 = por %p161, %p162
      %p164 = scmp.ne.s32.totalorder %s152, %s153
      %p165 = scmp.eq.s32.totalorder %s33, 1
      %p166 = por %p164, %p165
      %p168 = scmp.ne.s32.totalorder %s153, %s167
      %p169 = scmp.eq.s32.totalorder %s33, 0
      %p170 = por %p168, %p169
      %s172 = sadd.s32 %s171, 1
      %p175 = scmp.eq.s32.totalorder %s27, 1
      %p176 = scmp.ne.s32.totalorder %s171, %s173
      %p177 = scmp.eq.s32.totalorder %s27, 0
      %p178 = por %p176, %p177
      %p179 = scmp.ne.s32.totalorder %s171, %s173
      %p180 = scmp.eq.s32.totalorder %s32, 1
      %p181 = por %p179, %p180
      %p182 = scmp.ne.s32.totalorder %s173, %s174
      %p183 = scmp.eq.s32.totalorder %s32, 0
      %p184 = por %p182, %p183
      %p185 = scmp.ne.s32.totalorder %s173, %s174
      %p186 = scmp.eq.s32.totalorder %s33, 1
      %p187 = por %p185, %p186
      %p189 = scmp.ne.s32.totalorder %s174, %s188
      %p190 = scmp.eq.s32.totalorder %s33, 0
      %p191 = por %p189, %p190
      %s193 = sadd.s32 %s192, 1
      %p196 = scmp.eq.s32.totalorder %s27, 1
      %p197 = scmp.ne.s32.totalorder %s192, %s194
      %p198 = scmp.eq.s32.totalorder %s27, 0
      %p199 = por %p197, %p198
      %p200 = scmp.ne.s32.totalorder %s192, %s194
      %p201 = scmp.eq.s32.totalorder %s32, 1
      %p202 = por %p200, %p201
      %p203 = scmp.ne.s32.totalorder %s194, %s195
      %p204 = scmp.eq.s32.totalorder %s32, 0
      %p205 = por %p203, %p204
      %p206 = scmp.ne.s32.totalorder %s194, %s195
      %p207 = scmp.eq.s32.totalorder %s33, 1
      %p208 = por %p206, %p207
      %p210 = scmp.ne.s32.totalorder %s195, %s209
      %p211 = scmp.eq.s32.totalorder %s33, 0
      %p212 = por %p210, %p211
      %s214 = sadd.s32 %s213, 1
      %p217 = scmp.eq.s32.totalorder %s27, 1
      %p218 = scmp.ne.s32.totalorder %s213, %s215
      %p219 = scmp.eq.s32.totalorder %s27, 0
      %p220 = por %p218, %p219
      %p221 = scmp.ne.s32.totalorder %s213, %s215
      %p222 = scmp.eq.s32.totalorder %s32, 1
      %p223 = por %p221, %p222
      %p224 = scmp.ne.s32.totalorder %s215, %s216
      %p225 = scmp.eq.s32.totalorder %s32, 0
      %p226 = por %p224, %p225
      %p227 = scmp.ne.s32.totalorder %s215, %s216
      %p228 = scmp.eq.s32.totalorder %s33, 1
      %p229 = por %p227, %p228
      %p231 = scmp.ne.s32.totalorder %s216, %s230
      %p232 = scmp.eq.s32.totalorder %s33, 0
      %p233 = por %p231, %p232
      %s234 = ssub.s32 %s27, %s34
      %p235 = scmp.eq.s32.totalorder %s234, 0
      %s237 = sadd.s32 %s236, 1
      %s238 = scalar_select %p235, %s236, %s237
      %p241 = pneg %p235
      %p242 = scmp.eq.s32.totalorder %s27, 1
      %p243 = por %p241, %p242
      %p244 = scmp.ne.s32.totalorder %s236, %s239
      %p245 = scmp.eq.s32.totalorder %s27, 0
      %p246 = por %p244, %p245
      %p247 = scmp.ne.s32.totalorder %s236, %s239
      %p248 = scmp.eq.s32.totalorder %s32, 1
      %p249 = por %p247, %p248
      %p250 = scmp.ne.s32.totalorder %s239, %s240
      %p251 = scmp.eq.s32.totalorder %s32, 0
      %p252 = por %p250, %p251
      %p253 = scmp.ne.s32.totalorder %s239, %s240
      %p254 = scmp.eq.s32.totalorder %s33, 1
      %p255 = por %p253, %p254
      %p257 = scmp.ne.s32.totalorder %s240, %s256
      %p258 = scmp.eq.s32.totalorder %s33, 0
      %p259 = por %p257, %p258
      %p260 = scmp.le.s32.totalorder 1, %s27
      %p261 = scmp.lt.s32.totalorder %s27, 3
      %p262 = pnand %p260, %p261
      %p263 = pneg %p262
      // Predicated region
      $region9: #{tpu_custom_call.1} parent=5 // pred_check
        _
      $region10: #{tpu_custom_call.1} parent=5 // pred_check_branch
        %265 = sbr.rel (%p262) target = $region12
      $region11: #{tpu_custom_call.1} parent=5 // pred_region
        %s266 = ssub.s32 %s27, 1
        // Predicated region
        $region13: #{tpu_custom_call.1} parent=11 // pred_check
          %p267 = pneg %p100
        $region14: #{tpu_custom_call.1} parent=11 // pred_check_branch
          %269 = sbr.rel (%p267) target = $region16
        $region15: #{tpu_custom_call.1} parent=11 // pred_region
          %s271 = ssub.s32 32, 32
          %272 = vsyncadd [#allocation8], %s271
          %s274 = sshll.u32 [#allocation9], 4
          %s275 = int_to_ptr.vmem [resolvable:$true] %s274
          %277 = dma.hbm_to_vmem [thread:$0]  %s3, 32, %s275, [#allocation8]
        $region16: #{tpu_custom_call.1} parent=11 // pred_fallthru
          _
        // Predicated region
        $region17: #{tpu_custom_call.1} parent=11 // pred_check
          %p278 = pneg %p121
        $region18: #{tpu_custom_call.1} parent=11 // pred_check_branch
          %280 = sbr.rel (%p278) target = $region20
        $region19: #{tpu_custom_call.1} parent=11 // pred_region
          _
        $region20: #{tpu_custom_call.1} parent=11 // pred_fallthru
          _
        // Predicated region
        $region21: #{tpu_custom_call.1} parent=11 // pred_check
          %p281 = pneg %p142
        $region22: #{tpu_custom_call.1} parent=11 // pred_check_branch
          %283 = sbr.rel (%p281) target = $region24
        $region23: #{tpu_custom_call.1} parent=11 // pred_region
          _
        $region24: #{tpu_custom_call.1} parent=11 // pred_fallthru
          _
        // Predicated region
        $region25: #{tpu_custom_call.1} parent=11 // pred_check
          %p284 = pneg %p163
        $region26: #{tpu_custom_call.1} parent=11 // pred_check_branch
          %286 = sbr.rel (%p284) target = $region28
        $region27: #{tpu_custom_call.1} parent=11 // pred_region
          _
        $region28: #{tpu_custom_call.1} parent=11 // pred_fallthru
          _
        // Predicated region
        $region29: #{tpu_custom_call.1} parent=11 // pred_check
          %p287 = pneg %p184
        $region30: #{tpu_custom_call.1} parent=11 // pred_check_branch
          %289 = sbr.rel (%p287) target = $region32
        $region31: #{tpu_custom_call.1} parent=11 // pred_region
          %s291 = ssub.s32 512, 512
          %292 = vsyncadd [#allocation11], %s291
          %s293 = sshll.u32 [#allocation10], 4
          %s294 = int_to_ptr.vmem [resolvable:$true] %s293
          %299 = dma.hbm_to_vmem [thread:$0]  %s7, 512, %s294, [#allocation11], 64, 64, 4
        $region32: #{tpu_custom_call.1} parent=11 // pred_fallthru
          _
        // Predicated region
        $region33: #{tpu_custom_call.1} parent=11 // pred_check
          %p300 = pneg %p205
        $region34: #{tpu_custom_call.1} parent=11 // pred_check_branch
          %302 = sbr.rel (%p300) target = $region36
        $region35: #{tpu_custom_call.1} parent=11 // pred_region
          _
        $region36: #{tpu_custom_call.1} parent=11 // pred_fallthru
          _
        // Predicated region
        $region37: #{tpu_custom_call.1} parent=11 // pred_check
          %p303 = pneg %p226
        $region38: #{tpu_custom_call.1} parent=11 // pred_check_branch
          %305 = sbr.rel (%p303) target = $region40
        $region39: #{tpu_custom_call.1} parent=11 // pred_region
          _
        $region40: #{tpu_custom_call.1} parent=11 // pred_fallthru
          _
      $region12: #{tpu_custom_call.1} parent=5 // pred_fallthru
        _
      %p306 = scmp.lt.s32.totalorder %s27, 2
      // Predicated region
      $region41: #{tpu_custom_call.1} parent=5 // pred_check
        %p307 = pneg %p306
      $region42: #{tpu_custom_call.1} parent=5 // pred_check_branch
        %309 = sbr.rel (%p307) target = $region44
      $region43: #{tpu_custom_call.1} parent=5 // pred_region
        // Predicated region
        $region45: #{tpu_custom_call.1} parent=43 // pred_check
          %p310 = pneg %p47
        $region46: #{tpu_custom_call.1} parent=43 // pred_check_branch
          %312 = sbr.rel (%p310) target = $region48
        $region47: #{tpu_custom_call.1} parent=43 // pred_region
          %s313 = sand.u32 %s37, 1
          %s314 = scalar_lea.sflag [#allocation6], %s313
          %s315 = sand.u32 %s37, 1
          %s316 = smul.addr %s315, 8
          %s317 = scalar_lea.vmem [#allocation5], %s316
          %s319 = ssub.s32 128, 128
          %320 = vsyncadd %s314, %s319
          %s321 = smul.addr %s27, 128
          %s322 = scalar_lea.hbm %s1, %s321
          %s324 = sshll.u32 %s317, 4
          %s325 = int_to_ptr.vmem [resolvable:$true] %s324
          %327 = dma.hbm_to_vmem [thread:$0]  %s322, 128, %s325, %s314
        $region48: #{tpu_custom_call.1} parent=43 // pred_fallthru
          _
        // Predicated region
        $region49: #{tpu_custom_call.1} parent=43 // pred_check
          %p328 = pneg %p73
        $region50: #{tpu_custom_call.1} parent=43 // pred_check_branch
          %330 = sbr.rel (%p328) target = $region52
        $region51: #{tpu_custom_call.1} parent=43 // pred_region
          %s331 = sand.u32 %s27, 1
          %s332 = scalar_lea.sflag [#allocation8], %s331
          %s333 = sand.u32 %s63, 1
          %s334 = scalar_lea.vmem [#allocation7], %s333
          %s336 = ssub.s32 16, 16
          %337 = vsyncadd %s332, %s336
          %s338 = smul.addr %s27, 16
          %s339 = scalar_lea.hbm %s2, %s338
          %s341 = sshll.u32 %s334, 4
          %s342 = int_to_ptr.vmem [resolvable:$true] %s341
          %344 = dma.hbm_to_vmem [thread:$0]  %s339, 16, %s342, %s332
        $region52: #{tpu_custom_call.1} parent=43 // pred_fallthru
          _
      $region44: #{tpu_custom_call.1} parent=5 // pred_fallthru
        _
      %p345 = scmp.le.s32.totalorder 1, %s27
      %p346 = scmp.lt.s32.totalorder %s27, 3
      %p347 = pnand %p345, %p346
      %p348 = pneg %p347
      // Predicated region
      $region53: #{tpu_custom_call.1} parent=5 // pred_check
        _
      $region54: #{tpu_custom_call.1} parent=5 // pred_check_branch
        %350 = sbr.rel (%p347) target = $region56
      $region55: #{tpu_custom_call.1} parent=5 // pred_region
        %s351 = ssub.s32 %s27, 1
        %s352 = sand.u32 %s40, 1
        %s353 = scalar_lea.sflag [#allocation6], %s352
        %s354 = sand.u32 %s40, 1
        %s355 = smul.addr %s354, 8
        %s356 = scalar_lea.vmem [#allocation5], %s355
        // Predicated region
        $region57: #{tpu_custom_call.1} parent=55 // pred_check
          %p357 = pneg %p53
        $region58: #{tpu_custom_call.1} parent=55 // pred_check_branch
          %359 = sbr.rel (%p357) target = $region60
        $region59: #{tpu_custom_call.1} parent=55 // pred_region
          %360 = dma.done %s353, 128
        $region60: #{tpu_custom_call.1} parent=55 // pred_fallthru
          _
        %s361 = sand.u32 %s32, 1
        %s362 = scalar_lea.sflag [#allocation8], %s361
        %s363 = sand.u32 %s66, 1
        %s364 = scalar_lea.vmem [#allocation7], %s363
        // Predicated region
        $region61: #{tpu_custom_call.1} parent=55 // pred_check
          %p365 = pneg %p79
        $region62: #{tpu_custom_call.1} parent=55 // pred_check_branch
          %367 = sbr.rel (%p365) target = $region64
        $region63: #{tpu_custom_call.1} parent=55 // pred_region
          %368 = dma.done %s362, 16
        $region64: #{tpu_custom_call.1} parent=55 // pred_fallthru
          _
        // Predicated region
        $region65: #{tpu_custom_call.1} parent=55 // pred_check
          %p369 = pneg %p100
        $region66: #{tpu_custom_call.1} parent=55 // pred_check_branch
          %371 = sbr.rel (%p369) target = $region68
        $region67: #{tpu_custom_call.1} parent=55 // pred_region
          %372 = dma.done [#allocation8], 32
        $region68: #{tpu_custom_call.1} parent=55 // pred_fallthru
          _
        // Predicated region
        $region69: #{tpu_custom_call.1} parent=55 // pred_check
          %p373 = pneg %p184
        $region70: #{tpu_custom_call.1} parent=55 // pred_check_branch
          %375 = sbr.rel (%p373) target = $region72
        $region71: #{tpu_custom_call.1} parent=55 // pred_region
          %376 = dma.done [#allocation11], 512
        $region72: #{tpu_custom_call.1} parent=55 // pred_fallthru
          _
        %s377 = sand.u32 %s40, 1
        %s378 = scalar_lea.sflag [#allocation6], %s377
        %s379 = sand.u32 %s40, 1
        %s380 = smul.addr %s379, 8
        %s381 = scalar_lea.vmem [#allocation5], %s380
        %p382 = pneg %p53
        %p383 = pneg %p50
        %s384 = sand.u32 %s32, 1
        %s385 = scalar_lea.sflag [#allocation8], %s384
        %s386 = sand.u32 %s66, 1
        %s387 = scalar_lea.vmem [#allocation7], %s386
        %p388 = pneg %p79
        %p389 = pneg %p76
        %p390 = pneg %p100
        %p391 = pneg %p97
        %p392 = pneg %p121
        %p393 = pneg %p118
        %p394 = pneg %p142
        %p395 = pneg %p139
        %p396 = pneg %p163
        %p397 = pneg %p160
        %p398 = pneg %p184
        %p399 = pneg %p181
        %p400 = pneg %p205
        %p401 = pneg %p202
        %p402 = pneg %p226
        %p403 = pneg %p223
        %p404 = pneg %p252
        %p405 = pneg %p249
        %p406 = scmp.lt.s32.totalorder %s32, 1
        %s407 = scalar_select %p406, %s32, 1
        %s408 = smul.addr %s407, 8
        %s409 = scalar_lea.vmem %s10, %s408
        %p410 = scmp.lt.s32.totalorder %s32, 1
        %s411 = scalar_select %p410, %s32, 1
        %s412 = smul.addr %s411, 8
        %s413 = scalar_lea.vmem %s10, %s412
        %v415 = vld [vmem:[%s4] sm:$0xff]
        %v416 = vld [vmem:[%s4 + $0x8] sm:$0xff]
        %v417 = vld [vmem:[%s4 + $0x10] sm:$0xff]
        %v418 = vld [vmem:[%s4 + $0x18] sm:$0xff]
        %v419 = vld [vmem:[%s364] sm:$0x1]
        %v420 = vld [vmem:[%s356] sm:$0xff]
        %v421 = vld [vmem:[#allocation9] sm:$0x1]
        %v422 = vld [vmem:[#allocation9 + $0x1] sm:$0x1]
        %vm423 = vcmask 261120
        %v424 = vsel %vm423, %v420, 0.0
        %425 = vadd.xlane.f32.xlu0 %v424
        %v426 = vpop.xlane.xlu0 %425
        %v427 = vrcp.pop 32.0
        %v428 = vmul.f32 %v426, %v427
        %v429 = vsub.f32 %v420, %v428
        %v430 = vmul.f32 %v429, %v429
        %v431 = vsel %vm423, %v430, 0.0
        %432 = vadd.xlane.f32.xlu0 %v431
        %v433 = vpop.xlane.xlu0 %432
        %v434 = vmul.f32 %v433, %v427
        %v435 = vadd.f32 %v434, 1e-12
        %v436 = vrsqrt.pop %v435
        %v437 = vmul.f32 %v429, %v436
        %v438 = vlaneseq
        %v439 = vshrl.u32 %v438, 7
        %v440 = vsub.s32 0, %v439
        %v441 = vrot.slane %v421, %v440
        %v442 = vmul.f32 %v437, %v441
        %v443 = vlaneseq
        %v444 = vshrl.u32 %v443, 7
        %v445 = vsub.s32 0, %v444
        %v446 = vrot.slane %v422, %v445
        %v447 = vadd.f32 %v442, %v446
        %v448 = vld [vmem:[%s9] sm:$0xf]
        %v449 = vpack.c.bf16 %v447, %v447
        %v450 = vld [vmem:[%s5] sm:$0xf]
        %v451 = vld [vmem:[%s5 + $0x4] sm:$0xf]
        %v452 = vld [vmem:[%s5 + $0x8] sm:$0xf]
        %v453 = vld [vmem:[%s5 + $0xc] sm:$0xf]
        %v454 = vlaneseq
        %v455 = vshrl.u32 %v454, 7
        %v456 = vsub.s32 0, %v455
        %v457 = vrot.slane %v448, %v456
        %v462 = vunpack.c.l.b16 %v450
        %v463 = vunpack.c.l.b16 %v451
        %v464 = vunpack.c.l.b16 %v452
        %v465 = vunpack.c.l.b16 %v453
        %v466 = vpack.c.b16 %v463, %v462
        %v467 = vpack.c.b16 %v465, %v464
        %v471 = vsel %vm423, %v449, 0
        %473 = vmatprep.subr.bf16.mxu0 0
        %474 = vmatpush1.bf16.msra.mxu0 0
        %475 = vmatprep.subr.bf16.mxu0 0
        %476 = vmatpush1.bf16.msra.mxu0 0
        %477 = vmatprep.subr.bf16.mxu0 0
        %478 = vmatpush1.bf16.msra.mxu0 0
        %479 = vmatprep.subr.bf16.mxu0 0
        %480 = vmatpush1.bf16.msra.mxu0 0
        %481 = vmatprep.subr.bf16.mxu0 0
        %482 = vmatpush1.bf16.msra.mxu0 0
        %483 = vmatprep.subr.bf16.mxu0 0
        %484 = vmatpush1.bf16.msra.mxu0 0
        %485 = vmatprep.subr.bf16.mxu0 0
        %486 = vmatpush1.bf16.msra.mxu0 %v467
        %487 = vmatprep.subr.bf16.mxu0 0
        %488 = vmatpush1.bf16.msra.mxu0 %v466
        %489 = vmatprep.subr.bf16.mxu0 0
        %490 = vmatpush2.bf16.msra.mxu0 0
        %491 = vmatprep.subr.bf16.mxu0 0
        %492 = vmatpush2.bf16.msra.mxu0 0
        %493 = vmatprep.subr.bf16.mxu0 0
        %494 = vmatpush2.bf16.msra.mxu0 0
        %495 = vmatprep.subr.bf16.mxu0 0
        %496 = vmatpush2.bf16.msra.mxu0 0
        %497 = vmatprep.subr.bf16.mxu0 0
        %498 = vmatpush2.bf16.msra.mxu0 0
        %499 = vmatprep.subr.bf16.mxu0 0
        %500 = vmatpush2.bf16.msra.mxu0 0
        %501 = vmatprep.subr.bf16.mxu0 0
        %502 = vmatpush2.bf16.msra.mxu0 0
        %503 = vmatprep.subr.bf16.mxu0 0
        %504 = vmatpush2.bf16.msra.mxu0 0
        %505 = vmatprep.mubr.bf16.mxu0 0
        %506 = vmatmul.mubr.bf16.gmra.mxu0 %v471
        %v507 = vpop.f32.mrf.mxu0
        %v508 = vadd.f32 %v457, %v507
        %v509 = vpop.f32.mrf.mxu0
        %v510 = vpop.f32.mrf.mxu0
        %v511 = vpop.f32.mrf.mxu0
        %512 = vdwg.mxu0
        %v513 = vmul.f32 %v508, 0.35355338
        %v514 = vmul.f32 %v513, %v415
        %v515 = vmul.f32 %v513, %v416
        %v516 = vmul.f32 %v513, %v417
        %v517 = vmul.f32 %v513, %v418
        %v518 = vpack.c.bf16 %v515, %v514
        %v519 = vpack.c.bf16 %v517, %v516
        %v520 = vpack.c.bf16 %v508, %v508
        %v522 = vlaneseq
        %v523 = vshrl.u32 %v522, 7
        %v524 = vsub.s32 0, %v523
        %v525 = vrot.slane %v419, %v524
        %528 = vrot.lane.b32.xlu0 %v520, 96
        %v529 = vpop.permute.xlu0 %528
        %v531 = vsel %vm423, %v518, 0
        %v534 = vsel %vm423, %v519, 0
        %v537 = vsel %vm423, %v529, 0
        %539 = vmatprep.subr.bf16.mxu0 0
        %540 = vmatpush1.bf16.xpose.msra.mxu0 0
        %541 = vmatprep.subr.bf16.mxu0 0
        %542 = vmatpush1.bf16.xpose.msra.mxu0 0
        %543 = vmatprep.subr.bf16.mxu0 0
        %544 = vmatpush1.bf16.xpose.msra.mxu0 0
        %545 = vmatprep.subr.bf16.mxu0 0
        %546 = vmatpush1.bf16.xpose.msra.mxu0 0
        %547 = vmatprep.subr.bf16.mxu0 0
        %548 = vmatpush1.bf16.xpose.msra.mxu0 0
        %549 = vmatprep.subr.bf16.mxu0 0
        %550 = vmatpush1.bf16.xpose.msra.mxu0 0
        %551 = vmatprep.subr.bf16.mxu0 0
        %552 = vmatpush1.bf16.xpose.msra.mxu0 0
        %553 = vmatprep.subr.bf16.mxu0 0
        %554 = vmatpush1.bf16.xpose.msra.mxu0 %v537
        %555 = vmatprep.subr.bf16.mxu0 0
        %556 = vmatpush2.bf16.xpose.msra.mxu0 0
        %557 = vmatprep.subr.bf16.mxu0 0
        %558 = vmatpush2.bf16.xpose.msra.mxu0 0
        %559 = vmatprep.subr.bf16.mxu0 0
        %560 = vmatpush2.bf16.xpose.msra.mxu0 0
        %561 = vmatprep.subr.bf16.mxu0 0
        %562 = vmatpush2.bf16.xpose.msra.mxu0 0
        %563 = vmatprep.subr.bf16.mxu0 0
        %564 = vmatpush2.bf16.xpose.msra.mxu0 0
        %565 = vmatprep.subr.bf16.mxu0 0
        %566 = vmatpush2.bf16.xpose.msra.mxu0 0
        %567 = vmatprep.subr.bf16.mxu0 0
        %568 = vmatpush2.bf16.xpose.msra.mxu0 0
        %569 = vmatprep.subr.bf16.mxu0 0
        %570 = vmatpush2.bf16.xpose.msra.mxu0 0
        %571 = vmatprep.mubr.bf16.mxu0 0
        %572 = vmatmul.mubr.bf16.gmra.mxu0 %v531
        %v573 = vpop.f32.mrf.mxu0
        %v574 = vadd.f32 %v525, %v573
        %v575 = vpop.f32.mrf.mxu0
        %v576 = vpop.f32.mrf.mxu0
        %v577 = vadd.f32 %v525, %v576
        %v578 = vpop.f32.mrf.mxu0
        %579 = vmatprep.mubr.bf16.mxu0 0
        %580 = vmatmul.mubr.bf16.gmra.mxu0 %v534
        %v581 = vpop.f32.mrf.mxu0
        %v582 = vadd.f32 %v525, %v581
        %v583 = vpop.f32.mrf.mxu0
        %v584 = vpop.f32.mrf.mxu0
        %v585 = vadd.f32 %v525, %v584
        %v586 = vpop.f32.mrf.mxu0
        %587 = vdwg.mxu0
        %vm588 = vcmask 64512
        %v589 = vsel %vm588, %v574, -inf
        %590 = vmax.xlane.f32.xlu0 %v589
        %v591 = vpop.xlane.xlu0 %590
        %v592 = vsel %vm588, %v577, -inf
        %593 = vmax.xlane.f32.xlu0 %v592
        %v594 = vpop.xlane.xlu0 %593
        %v595 = vsel %vm588, %v582, -inf
        %596 = vmax.xlane.f32.xlu0 %v595
        %v597 = vpop.xlane.xlu0 %596
        %v598 = vsel %vm588, %v585, -inf
        %599 = vmax.xlane.f32.xlu0 %v598
        %v600 = vpop.xlane.xlu0 %599
        %v601 = vsub.f32 %v574, %v591
        %v602 = vsub.f32 %v577, %v594
        %v603 = vsub.f32 %v582, %v597
        %v604 = vsub.f32 %v585, %v600
        %v605 = vmul.f32 %v601, 1.442695
        %v606 = vpow.pop %v605
        %v607 = vmul.f32 %v602, 1.442695
        %v608 = vpow.pop %v607
        %v609 = vmul.f32 %v603, 1.442695
        %v610 = vpow.pop %v609
        %v611 = vmul.f32 %v604, 1.442695
        %v612 = vpow.pop %v611
        %v613 = vsel %vm588, %v606, 0.0
        %614 = vadd.xlane.f32.xlu0 %v613
        %v615 = vpop.xlane.xlu0 %614
        %v616 = vsel %vm588, %v608, 0.0
        %617 = vadd.xlane.f32.xlu0 %v616
        %v618 = vpop.xlane.xlu0 %617
        %v619 = vsel %vm588, %v610, 0.0
        %620 = vadd.xlane.f32.xlu0 %v619
        %v621 = vpop.xlane.xlu0 %620
        %v622 = vsel %vm588, %v612, 0.0
        %623 = vadd.xlane.f32.xlu0 %v622
        %v624 = vpop.xlane.xlu0 %623
        %v625 = vrcp.pop %v615
        %v626 = vmul.f32 %v606, %v625
        %v627 = vrcp.pop %v618
        %v628 = vmul.f32 %v608, %v627
        %v629 = vrcp.pop %v621
        %v630 = vmul.f32 %v610, %v629
        %v631 = vrcp.pop %v624
        %v632 = vmul.f32 %v612, %v631
        %v633 = vpack.c.bf16 %v628, %v626
        %v634 = vpack.c.bf16 %v632, %v630
        %635 = vrot.lane.b32.xlu0 %v520, 64
        %v636 = vpop.permute.xlu0 %635
        %v638 = vsel %vm588, %v633, 0
        %v641 = vsel %vm588, %v634, 0
        %vm643 = vcmask 1043456
        %v645 = vsel %vm643, %v636, 0
        %647 = vmatprep.subr.bf16.mxu0 0
        %648 = vmatpush1.bf16.msra.mxu0 0
        %649 = vmatprep.subr.bf16.mxu0 0
        %650 = vmatpush1.bf16.msra.mxu0 0
        %651 = vmatprep.subr.bf16.mxu0 0
        %652 = vmatpush1.bf16.msra.mxu0 0
        %653 = vmatprep.subr.bf16.mxu0 0
        %654 = vmatpush1.bf16.msra.mxu0 0
        %655 = vmatprep.subr.bf16.mxu0 0
        %656 = vmatpush1.bf16.msra.mxu0 0
        %657 = vmatprep.subr.bf16.mxu0 0
        %658 = vmatpush1.bf16.msra.mxu0 0
        %659 = vmatprep.subr.bf16.mxu0 0
        %660 = vmatpush1.bf16.msra.mxu0 0
        %661 = vmatprep.subr.bf16.mxu0 0
        %662 = vmatpush1.bf16.msra.mxu0 %v645
        %663 = vmatprep.subr.bf16.mxu0 0
        %664 = vmatpush2.bf16.msra.mxu0 0
        %665 = vmatprep.subr.bf16.mxu0 0
        %666 = vmatpush2.bf16.msra.mxu0 0
        %667 = vmatprep.subr.bf16.mxu0 0
        %668 = vmatpush2.bf16.msra.mxu0 0
        %669 = vmatprep.subr.bf16.mxu0 0
        %670 = vmatpush2.bf16.msra.mxu0 0
        %671 = vmatprep.subr.bf16.mxu0 0
        %672 = vmatpush2.bf16.msra.mxu0 0
        %673 = vmatprep.subr.bf16.mxu0 0
        %674 = vmatpush2.bf16.msra.mxu0 0
        %675 = vmatprep.subr.bf16.mxu0 0
        %676 = vmatpush2.bf16.msra.mxu0 0
        %677 = vmatprep.subr.bf16.mxu0 0
        %678 = vmatpush2.bf16.msra.mxu0 0
        %679 = vmatprep.mubr.bf16.mxu0 0
        %680 = vmatmul.mubr.bf16.gmra.mxu0 %v638
        %v681 = vpop.f32.mrf.mxu0
        %v682 = vadd.f32 0.0, %v681
        %v683 = vpop.f32.mrf.mxu0
        %v684 = vpop.f32.mrf.mxu0
        %v685 = vadd.f32 0.0, %v684
        %v686 = vpop.f32.mrf.mxu0
        %687 = vmatprep.mubr.bf16.mxu0 0
        %688 = vmatmul.mubr.bf16.gmra.mxu0 %v641
        %v689 = vpop.f32.mrf.mxu0
        %v690 = vadd.f32 0.0, %v689
        %v691 = vpop.f32.mrf.mxu0
        %v692 = vpop.f32.mrf.mxu0
        %v693 = vadd.f32 0.0, %v692
        %v694 = vpop.f32.mrf.mxu0
        %695 = vdwg.mxu0
        %v696 = vmul.f32 %v682, %v415
        %v697 = vmul.f32 %v685, %v416
        %v698 = vmul.f32 %v690, %v417
        %v699 = vmul.f32 %v693, %v418
        %v700 = vadd.f32 %v696, %v697
        %v701 = vadd.f32 %v700, %v698
        %v702 = vadd.f32 %v701, %v699
        %v703 = vpack.c.bf16 %v702, %v702
        %v704 = vld [vmem:[%s6] sm:$0xf]
        %v705 = vld [vmem:[%s6 + $0x4] sm:$0xf]
        %v706 = vld [vmem:[%s6 + $0x8] sm:$0xf]
        %v707 = vld [vmem:[%s6 + $0xc] sm:$0xf]
        %v708 = vlaneseq
        %v709 = vshrl.u32 %v708, 7
        %v710 = vsub.s32 1, %v709
        %v711 = vrot.slane %v448, %v710
        %v716 = vunpack.c.l.b16 %v704
        %v717 = vunpack.c.l.b16 %v705
        %v718 = vunpack.c.l.b16 %v706
        %v719 = vunpack.c.l.b16 %v707
        %v720 = vpack.c.b16 %v717, %v716
        %v721 = vpack.c.b16 %v719, %v718
        %v725 = vsel %vm423, %v703, 0
        %727 = vmatprep.subr.bf16.mxu0 0
        %728 = vmatpush1.bf16.msra.mxu0 0
        %729 = vmatprep.subr.bf16.mxu0 0
        %730 = vmatpush1.bf16.msra.mxu0 0
        %731 = vmatprep.subr.bf16.mxu0 0
        %732 = vmatpush1.bf16.msra.mxu0 0
        %733 = vmatprep.subr.bf16.mxu0 0
        %734 = vmatpush1.bf16.msra.mxu0 0
        %735 = vmatprep.subr.bf16.mxu0 0
        %736 = vmatpush1.bf16.msra.mxu0 0
        %737 = vmatprep.subr.bf16.mxu0 0
        %738 = vmatpush1.bf16.msra.mxu0 0
        %739 = vmatprep.subr.bf16.mxu0 0
        %740 = vmatpush1.bf16.msra.mxu0 %v721
        %741 = vmatprep.subr.bf16.mxu0 0
        %742 = vmatpush1.bf16.msra.mxu0 %v720
        %743 = vmatprep.subr.bf16.mxu0 0
        %744 = vmatpush2.bf16.msra.mxu0 0
        %745 = vmatprep.subr.bf16.mxu0 0
        %746 = vmatpush2.bf16.msra.mxu0 0
        %747 = vmatprep.subr.bf16.mxu0 0
        %748 = vmatpush2.bf16.msra.mxu0 0
        %749 = vmatprep.subr.bf16.mxu0 0
        %750 = vmatpush2.bf16.msra.mxu0 0
        %751 = vmatprep.subr.bf16.mxu0 0
        %752 = vmatpush2.bf16.msra.mxu0 0
        %753 = vmatprep.subr.bf16.mxu0 0
        %754 = vmatpush2.bf16.msra.mxu0 0
        %755 = vmatprep.subr.bf16.mxu0 0
        %756 = vmatpush2.bf16.msra.mxu0 0
        %757 = vmatprep.subr.bf16.mxu0 0
        %758 = vmatpush2.bf16.msra.mxu0 0
        %759 = vmatprep.mubr.bf16.mxu0 0
        %760 = vmatmul.mubr.bf16.gmra.mxu0 %v725
        %v761 = vpop.f32.mrf.mxu0
        %v762 = vadd.f32 %v711, %v761
        %v763 = vpop.f32.mrf.mxu0
        %v764 = vpop.f32.mrf.mxu0
        %v765 = vpop.f32.mrf.mxu0
        %766 = vdwg.mxu0
        %v767 = vadd.f32 %v447, %v762
        %v768 = vsel %vm423, %v767, 0.0
        %769 = vadd.xlane.f32.xlu0 %v768
        %v770 = vpop.xlane.xlu0 %769
        %v771 = vmul.f32 %v770, %v427
        %v772 = vsub.f32 %v767, %v771
        %v773 = vmul.f32 %v772, %v772
        %v774 = vsel %vm423, %v773, 0.0
        %775 = vadd.xlane.f32.xlu0 %v774
        %v776 = vpop.xlane.xlu0 %775
        %v777 = vmul.f32 %v776, %v427
        %v778 = vadd.f32 %v777, 1e-12
        %v779 = vrsqrt.pop %v778
        %v780 = vmul.f32 %v772, %v779
        %782 = vrot.lane.b32.xlu0 %v711, 96
        %v783 = vpop.permute.xlu0 %782
        %v785 = vmul.f32 %v780, %v783
        %786 = vrot.lane.b32.xlu0 %v711, 64
        %v787 = vpop.permute.xlu0 %786
        %v789 = vadd.f32 %v785, %v787
        %v790 = vpack.c.bf16 %v789, %v789
        %v791 = vld [vmem:[#allocation10] sm:$0xf]
        %v792 = vld [vmem:[#allocation10 + $0x4] sm:$0xf]
        %v793 = vld [vmem:[#allocation10 + $0x8] sm:$0xf]
        %v794 = vld [vmem:[#allocation10 + $0xc] sm:$0xf]
        %v795 = vlaneseq
        %v796 = vshrl.u32 %v795, 7
        %v797 = vsub.s32 3, %v796
        %v798 = vrot.slane %v448, %v797
        %v803 = vunpack.c.l.b16 %v791
        %v804 = vunpack.c.l.b16 %v792
        %v805 = vunpack.c.l.b16 %v793
        %v806 = vunpack.c.l.b16 %v794
        %v807 = vpack.c.b16 %v804, %v803
        %v808 = vpack.c.b16 %v806, %v805
        %v812 = vsel %vm423, %v790, 0
        %814 = vmatprep.subr.bf16.mxu0 0
        %815 = vmatpush1.bf16.msra.mxu0 0
        %816 = vmatprep.subr.bf16.mxu0 0
        %817 = vmatpush1.bf16.msra.mxu0 0
        %818 = vmatprep.subr.bf16.mxu0 0
        %819 = vmatpush1.bf16.msra.mxu0 0
        %820 = vmatprep.subr.bf16.mxu0 0
        %821 = vmatpush1.bf16.msra.mxu0 0
        %822 = vmatprep.subr.bf16.mxu0 0
        %823 = vmatpush1.bf16.msra.mxu0 0
        %824 = vmatprep.subr.bf16.mxu0 0
        %825 = vmatpush1.bf16.msra.mxu0 0
        %826 = vmatprep.subr.bf16.mxu0 0
        %827 = vmatpush1.bf16.msra.mxu0 %v808
        %828 = vmatprep.subr.bf16.mxu0 0
        %829 = vmatpush1.bf16.msra.mxu0 %v807
        %830 = vmatprep.subr.bf16.mxu0 0
        %831 = vmatpush2.bf16.msra.mxu0 0
        %832 = vmatprep.subr.bf16.mxu0 0
        %833 = vmatpush2.bf16.msra.mxu0 0
        %834 = vmatprep.subr.bf16.mxu0 0
        %835 = vmatpush2.bf16.msra.mxu0 0
        %836 = vmatprep.subr.bf16.mxu0 0
        %837 = vmatpush2.bf16.msra.mxu0 0
        %838 = vmatprep.subr.bf16.mxu0 0
        %839 = vmatpush2.bf16.msra.mxu0 0
        %840 = vmatprep.subr.bf16.mxu0 0
        %841 = vmatpush2.bf16.msra.mxu0 0
        %842 = vmatprep.subr.bf16.mxu0 0
        %843 = vmatpush2.bf16.msra.mxu0 0
        %844 = vmatprep.subr.bf16.mxu0 0
        %845 = vmatpush2.bf16.msra.mxu0 0
        %846 = vmatprep.mubr.bf16.mxu0 0
        %847 = vmatmul.mubr.bf16.gmra.mxu0 %v812
        %v848 = vpop.f32.mrf.mxu0
        %v849 = vadd.f32 %v798, %v848
        %v850 = vpop.f32.mrf.mxu0
        %v851 = vpop.f32.mrf.mxu0
        %v852 = vpop.f32.mrf.mxu0
        %853 = vdwg.mxu0
        %v854 = vmul.f32 %v849, %v849
        %v855 = vmul.f32 %v849, %v854
        %v856 = vmul.f32 %v855, 0.044715
        %v857 = vadd.f32 %v849, %v856
        %v858 = vmul.f32 %v857, 0.7978846
        %v859 = vtanh.pop %v858
        %v860 = vadd.f32 %v859, 1.0
        %v861 = vmul.f32 %v860, 0.5
        %v862 = vmul.f32 %v849, %v861
        %v863 = vpack.c.bf16 %v862, %v862
        %v864 = vld [vmem:[%s8] sm:$0xf]
        %v865 = vld [vmem:[%s8 + $0x4] sm:$0xf]
        %v866 = vld [vmem:[%s8 + $0x8] sm:$0xf]
        %v867 = vld [vmem:[%s8 + $0xc] sm:$0xf]
        %v868 = vld [vmem:[%s8 + $0x10] sm:$0xf]
        %v869 = vld [vmem:[%s8 + $0x14] sm:$0xf]
        %v870 = vld [vmem:[%s8 + $0x18] sm:$0xf]
        %v871 = vld [vmem:[%s8 + $0x1c] sm:$0xf]
        %v872 = vlaneseq
        %v873 = vshrl.u32 %v872, 7
        %v874 = vsub.s32 2, %v873
        %v875 = vrot.slane %v448, %v874
        %v884 = vunpack.c.l.b16 %v864
        %v885 = vunpack.c.l.b16 %v865
        %v886 = vunpack.c.l.b16 %v866
        %v887 = vunpack.c.l.b16 %v867
        %v888 = vunpack.c.l.b16 %v868
        %v889 = vunpack.c.l.b16 %v869
        %v890 = vunpack.c.l.b16 %v870
        %v891 = vunpack.c.l.b16 %v871
        %v892 = vpack.c.b16 %v885, %v884
        %v893 = vpack.c.b16 %v887, %v886
        %v894 = vpack.c.b16 %v889, %v888
        %v895 = vpack.c.b16 %v891, %v890
        %vm900 = vcmask 523264
        %v902 = vsel %vm900, %v863, 0
        %904 = vmatprep.subr.bf16.mxu0 0
        %905 = vmatpush1.bf16.msra.mxu0 0
        %906 = vmatprep.subr.bf16.mxu0 0
        %907 = vmatpush1.bf16.msra.mxu0 0
        %908 = vmatprep.subr.bf16.mxu0 0
        %909 = vmatpush1.bf16.msra.mxu0 0
        %910 = vmatprep.subr.bf16.mxu0 0
        %911 = vmatpush1.bf16.msra.mxu0 0
        %912 = vmatprep.subr.bf16.mxu0 0
        %913 = vmatpush1.bf16.msra.mxu0 %v895
        %914 = vmatprep.subr.bf16.mxu0 0
        %915 = vmatpush1.bf16.msra.mxu0 %v894
        %916 = vmatprep.subr.bf16.mxu0 0
        %917 = vmatpush1.bf16.msra.mxu0 %v893
        %918 = vmatprep.subr.bf16.mxu0 0
        %919 = vmatpush1.bf16.msra.mxu0 %v892
        %920 = vmatprep.subr.bf16.mxu0 0
        %921 = vmatpush2.bf16.msra.mxu0 0
        %922 = vmatprep.subr.bf16.mxu0 0
        %923 = vmatpush2.bf16.msra.mxu0 0
        %924 = vmatprep.subr.bf16.mxu0 0
        %925 = vmatpush2.bf16.msra.mxu0 0
        %926 = vmatprep.subr.bf16.mxu0 0
        %927 = vmatpush2.bf16.msra.mxu0 0
        %928 = vmatprep.subr.bf16.mxu0 0
        %929 = vmatpush2.bf16.msra.mxu0 0
        %930 = vmatprep.subr.bf16.mxu0 0
        %931 = vmatpush2.bf16.msra.mxu0 0
        %932 = vmatprep.subr.bf16.mxu0 0
        %933 = vmatpush2.bf16.msra.mxu0 0
        %934 = vmatprep.subr.bf16.mxu0 0
        %935 = vmatpush2.bf16.msra.mxu0 0
        %936 = vmatprep.mubr.bf16.mxu0 0
        %937 = vmatmul.mubr.bf16.gmra.mxu0 %v902
        %v938 = vpop.f32.mrf.mxu0
        %v939 = vadd.f32 %v875, %v938
        %v940 = vpop.f32.mrf.mxu0
        %v941 = vpop.f32.mrf.mxu0
        %v942 = vpop.f32.mrf.mxu0
        %943 = vdwg.mxu0
        %v944 = vadd.f32 %v789, %v939
        %v945 = vsel %vm423, %v944, 0.0
        %946 = vadd.xlane.f32.xlu0 %v945
        %v947 = vpop.xlane.xlu0 %946
        %v948 = vmul.f32 %v947, %v427
        %v949 = vsub.f32 %v944, %v948
        %v950 = vmul.f32 %v949, %v949
        %v951 = vsel %vm423, %v950, 0.0
        %952 = vadd.xlane.f32.xlu0 %v951
        %v953 = vpop.xlane.xlu0 %952
        %v954 = vmul.f32 %v953, %v427
        %v955 = vadd.f32 %v954, 1e-12
        %v956 = vrsqrt.pop %v955
        %v957 = vmul.f32 %v949, %v956
        %959 = vrot.lane.b32.xlu0 %v875, 96
        %v960 = vpop.permute.xlu0 %959
        %v962 = vmul.f32 %v957, %v960
        %963 = vrot.lane.b32.xlu0 %v875, 64
        %v964 = vpop.permute.xlu0 %963
        %v966 = vadd.f32 %v962, %v964
        %s967 = scalar_lea.vmem %s9, 4
        %v968 = vld [vmem:[%s967] sm:$0xf]
        %v969 = vpack.c.bf16 %v966, %v966
        %s970 = scalar_lea.vmem %s5, 16
        %v971 = vld [vmem:[%s970] sm:$0xf]
        %v972 = vld [vmem:[%s970 + $0x4] sm:$0xf]
        %v973 = vld [vmem:[%s970 + $0x8] sm:$0xf]
        %v974 = vld [vmem:[%s970 + $0xc] sm:$0xf]
        %v975 = vlaneseq
        %v976 = vshrl.u32 %v975, 7
        %v977 = vsub.s32 0, %v976
        %v978 = vrot.slane %v968, %v977
        %v983 = vunpack.c.l.b16 %v971
        %v984 = vunpack.c.l.b16 %v972
        %v985 = vunpack.c.l.b16 %v973
        %v986 = vunpack.c.l.b16 %v974
        %v987 = vpack.c.b16 %v984, %v983
        %v988 = vpack.c.b16 %v986, %v985
        %v992 = vsel %vm423, %v969, 0
        %994 = vmatprep.subr.bf16.mxu0 0
        %995 = vmatpush1.bf16.msra.mxu0 0
        %996 = vmatprep.subr.bf16.mxu0 0
        %997 = vmatpush1.bf16.msra.mxu0 0
        %998 = vmatprep.subr.bf16.mxu0 0
        %999 = vmatpush1.bf16.msra.mxu0 0
        %1000 = vmatprep.subr.bf16.mxu0 0
        %1001 = vmatpush1.bf16.msra.mxu0 0
        %1002 = vmatprep.subr.bf16.mxu0 0
        %1003 = vmatpush1.bf16.msra.mxu0 0
        %1004 = vmatprep.subr.bf16.mxu0 0
        %1005 = vmatpush1.bf16.msra.mxu0 0
        %1006 = vmatprep.subr.bf16.mxu0 0
        %1007 = vmatpush1.bf16.msra.mxu0 %v988
        %1008 = vmatprep.subr.bf16.mxu0 0
        %1009 = vmatpush1.bf16.msra.mxu0 %v987
        %1010 = vmatprep.subr.bf16.mxu0 0
        %1011 = vmatpush2.bf16.msra.mxu0 0
        %1012 = vmatprep.subr.bf16.mxu0 0
        %1013 = vmatpush2.bf16.msra.mxu0 0
        %1014 = vmatprep.subr.bf16.mxu0 0
        %1015 = vmatpush2.bf16.msra.mxu0 0
        %1016 = vmatprep.subr.bf16.mxu0 0
        %1017 = vmatpush2.bf16.msra.mxu0 0
        %1018 = vmatprep.subr.bf16.mxu0 0
        %1019 = vmatpush2.bf16.msra.mxu0 0
        %1020 = vmatprep.subr.bf16.mxu0 0
        %1021 = vmatpush2.bf16.msra.mxu0 0
        %1022 = vmatprep.subr.bf16.mxu0 0
        %1023 = vmatpush2.bf16.msra.mxu0 0
        %1024 = vmatprep.subr.bf16.mxu0 0
        %1025 = vmatpush2.bf16.msra.mxu0 0
        %1026 = vmatprep.mubr.bf16.mxu0 0
        %1027 = vmatmul.mubr.bf16.gmra.mxu0 %v992
        %v1028 = vpop.f32.mrf.mxu0
        %v1029 = vadd.f32 %v978, %v1028
        %v1030 = vpop.f32.mrf.mxu0
        %v1031 = vpop.f32.mrf.mxu0
        %v1032 = vpop.f32.mrf.mxu0
        %1033 = vdwg.mxu0
        %v1034 = vmul.f32 %v1029, 0.35355338
        %v1035 = vmul.f32 %v1034, %v415
        %v1036 = vmul.f32 %v1034, %v416
        %v1037 = vmul.f32 %v1034, %v417
        %v1038 = vmul.f32 %v1034, %v418
        %v1039 = vpack.c.bf16 %v1036, %v1035
        %v1040 = vpack.c.bf16 %v1038, %v1037
        %v1041 = vpack.c.bf16 %v1029, %v1029
        %1043 = vrot.lane.b32.xlu0 %v1041, 96
        %v1044 = vpop.permute.xlu0 %1043
        %v1046 = vsel %vm423, %v1039, 0
        %v1049 = vsel %vm423, %v1040, 0
        %v1052 = vsel %vm423, %v1044, 0
        %1054 = vmatprep.subr.bf16.mxu0 0
        %1055 = vmatpush1.bf16.xpose.msra.mxu0 0
        %1056 = vmatprep.subr.bf16.mxu0 0
        %1057 = vmatpush1.bf16.xpose.msra.mxu0 0
        %1058 = vmatprep.subr.bf16.mxu0 0
        %1059 = vmatpush1.bf16.xpose.msra.mxu0 0
        %1060 = vmatprep.subr.bf16.mxu0 0
        %1061 = vmatpush1.bf16.xpose.msra.mxu0 0
        %1062 = vmatprep.subr.bf16.mxu0 0
        %1063 = vmatpush1.bf16.xpose.msra.mxu0 0
        %1064 = vmatprep.subr.bf16.mxu0 0
        %1065 = vmatpush1.bf16.xpose.msra.mxu0 0
        %1066 = vmatprep.subr.bf16.mxu0 0
        %1067 = vmatpush1.bf16.xpose.msra.mxu0 0
        %1068 = vmatprep.subr.bf16.mxu0 0
        %1069 = vmatpush1.bf16.xpose.msra.mxu0 %v1052
        %1070 = vmatprep.subr.bf16.mxu0 0
        %1071 = vmatpush2.bf16.xpose.msra.mxu0 0
        %1072 = vmatprep.subr.bf16.mxu0 0
        %1073 = vmatpush2.bf16.xpose.msra.mxu0 0
        %1074 = vmatprep.subr.bf16.mxu0 0
        %1075 = vmatpush2.bf16.xpose.msra.mxu0 0
        %1076 = vmatprep.subr.bf16.mxu0 0
        %1077 = vmatpush2.bf16.xpose.msra.mxu0 0
        %1078 = vmatprep.subr.bf16.mxu0 0
        %1079 = vmatpush2.bf16.xpose.msra.mxu0 0
        %1080 = vmatprep.subr.bf16.mxu0 0
        %1081 = vmatpush2.bf16.xpose.msra.mxu0 0
        %1082 = vmatprep.subr.bf16.mxu0 0
        %1083 = vmatpush2.bf16.xpose.msra.mxu0 0
        %1084 = vmatprep.subr.bf16.mxu0 0
        %1085 = vmatpush2.bf16.xpose.msra.mxu0 0
        %1086 = vmatprep.mubr.bf16.mxu0 0
        %1087 = vmatmul.mubr.bf16.gmra.mxu0 %v1046
        %v1088 = vpop.f32.mrf.mxu0
        %v1089 = vadd.f32 %v525, %v1088
        %v1090 = vpop.f32.mrf.mxu0
        %v1091 = vpop.f32.mrf.mxu0
        %v1092 = vadd.f32 %v525, %v1091
        %v1093 = vpop.f32.mrf.mxu0
        %1094 = vmatprep.mubr.bf16.mxu0 0
        %1095 = vmatmul.mubr.bf16.gmra.mxu0 %v1049
        %v1096 = vpop.f32.mrf.mxu0
        %v1097 = vadd.f32 %v525, %v1096
        %v1098 = vpop.f32.mrf.mxu0
        %v1099 = vpop.f32.mrf.mxu0
        %v1100 = vadd.f32 %v525, %v1099
        %v1101 = vpop.f32.mrf.mxu0
        %1102 = vdwg.mxu0
        %v1103 = vsel %vm588, %v1089, -inf
        %1104 = vmax.xlane.f32.xlu0 %v1103
        %v1105 = vpop.xlane.xlu0 %1104
        %v1106 = vsel %vm588, %v1092, -inf
        %1107 = vmax.xlane.f32.xlu0 %v1106
        %v1108 = vpop.xlane.xlu0 %1107
        %v1109 = vsel %vm588, %v1097, -inf
        %1110 = vmax.xlane.f32.xlu0 %v1109
        %v1111 = vpop.xlane.xlu0 %1110
        %v1112 = vsel %vm588, %v1100, -inf
        %1113 = vmax.xlane.f32.xlu0 %v1112
        %v1114 = vpop.xlane.xlu0 %1113
        %v1115 = vsub.f32 %v1089, %v1105
        %v1116 = vsub.f32 %v1092, %v1108
        %v1117 = vsub.f32 %v1097, %v1111
        %v1118 = vsub.f32 %v1100, %v1114
        %v1119 = vmul.f32 %v1115, 1.442695
        %v1120 = vpow.pop %v1119
        %v1121 = vmul.f32 %v1116, 1.442695
        %v1122 = vpow.pop %v1121
        %v1123 = vmul.f32 %v1117, 1.442695
        %v1124 = vpow.pop %v1123
        %v1125 = vmul.f32 %v1118, 1.442695
        %v1126 = vpow.pop %v1125
        %v1127 = vsel %vm588, %v1120, 0.0
        %1128 = vadd.xlane.f32.xlu0 %v1127
        %v1129 = vpop.xlane.xlu0 %1128
        %v1130 = vsel %vm588, %v1122, 0.0
        %1131 = vadd.xlane.f32.xlu0 %v1130
        %v1132 = vpop.xlane.xlu0 %1131
        %v1133 = vsel %vm588, %v1124, 0.0
        %1134 = vadd.xlane.f32.xlu0 %v1133
        %v1135 = vpop.xlane.xlu0 %1134
        %v1136 = vsel %vm588, %v1126, 0.0
        %1137 = vadd.xlane.f32.xlu0 %v1136
        %v1138 = vpop.xlane.xlu0 %1137
        %v1139 = vrcp.pop %v1129
        %v1140 = vmul.f32 %v1120, %v1139
        %v1141 = vrcp.pop %v1132
        %v1142 = vmul.f32 %v1122, %v1141
        %v1143 = vrcp.pop %v1135
        %v1144 = vmul.f32 %v1124, %v1143
        %v1145 = vrcp.pop %v1138
        %v1146 = vmul.f32 %v1126, %v1145
        %v1147 = vpack.c.bf16 %v1142, %v1140
        %v1148 = vpack.c.bf16 %v1146, %v1144
        %1149 = vrot.lane.b32.xlu0 %v1041, 64
        %v1150 = vpop.permute.xlu0 %1149
        %v1152 = vsel %vm588, %v1147, 0
        %v1155 = vsel %vm588, %v1148, 0
        %v1158 = vsel %vm643, %v1150, 0
        %1160 = vmatprep.subr.bf16.mxu0 0
        %1161 = vmatpush1.bf16.msra.mxu0 0
        %1162 = vmatprep.subr.bf16.mxu0 0
        %1163 = vmatpush1.bf16.msra.mxu0 0
        %1164 = vmatprep.subr.bf16.mxu0 0
        %1165 = vmatpush1.bf16.msra.mxu0 0
        %1166 = vmatprep.subr.bf16.mxu0 0
        %1167 = vmatpush1.bf16.msra.mxu0 0
        %1168 = vmatprep.subr.bf16.mxu0 0
        %1169 = vmatpush1.bf16.msra.mxu0 0
        %1170 = vmatprep.subr.bf16.mxu0 0
        %1171 = vmatpush1.bf16.msra.mxu0 0
        %1172 = vmatprep.subr.bf16.mxu0 0
        %1173 = vmatpush1.bf16.msra.mxu0 0
        %1174 = vmatprep.subr.bf16.mxu0 0
        %1175 = vmatpush1.bf16.msra.mxu0 %v1158
        %1176 = vmatprep.subr.bf16.mxu0 0
        %1177 = vmatpush2.bf16.msra.mxu0 0
        %1178 = vmatprep.subr.bf16.mxu0 0
        %1179 = vmatpush2.bf16.msra.mxu0 0
        %1180 = vmatprep.subr.bf16.mxu0 0
        %1181 = vmatpush2.bf16.msra.mxu0 0
        %1182 = vmatprep.subr.bf16.mxu0 0
        %1183 = vmatpush2.bf16.msra.mxu0 0
        %1184 = vmatprep.subr.bf16.mxu0 0
        %1185 = vmatpush2.bf16.msra.mxu0 0
        %1186 = vmatprep.subr.bf16.mxu0 0
        %1187 = vmatpush2.bf16.msra.mxu0 0
        %1188 = vmatprep.subr.bf16.mxu0 0
        %1189 = vmatpush2.bf16.msra.mxu0 0
        %1190 = vmatprep.subr.bf16.mxu0 0
        %1191 = vmatpush2.bf16.msra.mxu0 0
        %1192 = vmatprep.mubr.bf16.mxu0 0
        %1193 = vmatmul.mubr.bf16.gmra.mxu0 %v1152
        %v1194 = vpop.f32.mrf.mxu0
        %v1195 = vadd.f32 0.0, %v1194
        %v1196 = vpop.f32.mrf.mxu0
        %v1197 = vpop.f32.mrf.mxu0
        %v1198 = vadd.f32 0.0, %v1197
        %v1199 = vpop.f32.mrf.mxu0
        %1200 = vmatprep.mubr.bf16.mxu0 0
        %1201 = vmatmul.mubr.bf16.gmra.mxu0 %v1155
        %v1202 = vpop.f32.mrf.mxu0
        %v1203 = vadd.f32 0.0, %v1202
        %v1204 = vpop.f32.mrf.mxu0
        %v1205 = vpop.f32.mrf.mxu0
        %v1206 = vadd.f32 0.0, %v1205
        %v1207 = vpop.f32.mrf.mxu0
        %1208 = vdwg.mxu0
        %v1209 = vmul.f32 %v1195, %v415
        %v1210 = vmul.f32 %v1198, %v416
        %v1211 = vmul.f32 %v1203, %v417
        %v1212 = vmul.f32 %v1206, %v418
        %v1213 = vadd.f32 %v1209, %v1210
        %v1214 = vadd.f32 %v1213, %v1211
        %v1215 = vadd.f32 %v1214, %v1212
        %v1216 = vpack.c.bf16 %v1215, %v1215
        %s1217 = scalar_lea.vmem %s6, 16
        %v1218 = vld [vmem:[%s1217] sm:$0xf]
        %v1219 = vld [vmem:[%s1217 + $0x4] sm:$0xf]
        %v1220 = vld [vmem:[%s1217 + $0x8] sm:$0xf]
        %v1221 = vld [vmem:[%s1217 + $0xc] sm:$0xf]
        %v1222 = vlaneseq
        %v1223 = vshrl.u32 %v1222, 7
        %v1224 = vsub.s32 1, %v1223
        %v1225 = vrot.slane %v968, %v1224
        %v1230 = vunpack.c.l.b16 %v1218
        %v1231 = vunpack.c.l.b16 %v1219
        %v1232 = vunpack.c.l.b16 %v1220
        %v1233 = vunpack.c.l.b16 %v1221
        %v1234 = vpack.c.b16 %v1231, %v1230
        %v1235 = vpack.c.b16 %v1233, %v1232
        %v1239 = vsel %vm423, %v1216, 0
        %1241 = vmatprep.subr.bf16.mxu0 0
        %1242 = vmatpush1.bf16.msra.mxu0 0
        %1243 = vmatprep.subr.bf16.mxu0 0
        %1244 = vmatpush1.bf16.msra.mxu0 0
        %1245 = vmatprep.subr.bf16.mxu0 0
        %1246 = vmatpush1.bf16.msra.mxu0 0
        %1247 = vmatprep.subr.bf16.mxu0 0
        %1248 = vmatpush1.bf16.msra.mxu0 0
        %1249 = vmatprep.subr.bf16.mxu0 0
        %1250 = vmatpush1.bf16.msra.mxu0 0
        %1251 = vmatprep.subr.bf16.mxu0 0
        %1252 = vmatpush1.bf16.msra.mxu0 0
        %1253 = vmatprep.subr.bf16.mxu0 0
        %1254 = vmatpush1.bf16.msra.mxu0 %v1235
        %1255 = vmatprep.subr.bf16.mxu0 0
        %1256 = vmatpush1.bf16.msra.mxu0 %v1234
        %1257 = vmatprep.subr.bf16.mxu0 0
        %1258 = vmatpush2.bf16.msra.mxu0 0
        %1259 = vmatprep.subr.bf16.mxu0 0
        %1260 = vmatpush2.bf16.msra.mxu0 0
        %1261 = vmatprep.subr.bf16.mxu0 0
        %1262 = vmatpush2.bf16.msra.mxu0 0
        %1263 = vmatprep.subr.bf16.mxu0 0
        %1264 = vmatpush2.bf16.msra.mxu0 0
        %1265 = vmatprep.subr.bf16.mxu0 0
        %1266 = vmatpush2.bf16.msra.mxu0 0
        %1267 = vmatprep.subr.bf16.mxu0 0
        %1268 = vmatpush2.bf16.msra.mxu0 0
        %1269 = vmatprep.subr.bf16.mxu0 0
        %1270 = vmatpush2.bf16.msra.mxu0 0
        %1271 = vmatprep.subr.bf16.mxu0 0
        %1272 = vmatpush2.bf16.msra.mxu0 0
        %1273 = vmatprep.mubr.bf16.mxu0 0
        %1274 = vmatmul.mubr.bf16.gmra.mxu0 %v1239
        %v1275 = vpop.f32.mrf.mxu0
        %v1276 = vadd.f32 %v1225, %v1275
        %v1277 = vpop.f32.mrf.mxu0
        %v1278 = vpop.f32.mrf.mxu0
        %v1279 = vpop.f32.mrf.mxu0
        %1280 = vdwg.mxu0
        %v1281 = vadd.f32 %v966, %v1276
        %v1282 = vsel %vm423, %v1281, 0.0
        %1283 = vadd.xlane.f32.xlu0 %v1282
        %v1284 = vpop.xlane.xlu0 %1283
        %v1285 = vmul.f32 %v1284, %v427
        %v1286 = vsub.f32 %v1281, %v1285
        %v1287 = vmul.f32 %v1286, %v1286
        %v1288 = vsel %vm423, %v1287, 0.0
        %1289 = vadd.xlane.f32.xlu0 %v1288
        %v1290 = vpop.xlane.xlu0 %1289
        %v1291 = vmul.f32 %v1290, %v427
        %v1292 = vadd.f32 %v1291, 1e-12
        %v1293 = vrsqrt.pop %v1292
        %v1294 = vmul.f32 %v1286, %v1293
        %1296 = vrot.lane.b32.xlu0 %v1225, 96
        %v1297 = vpop.permute.xlu0 %1296
        %v1299 = vmul.f32 %v1294, %v1297
        %1300 = vrot.lane.b32.xlu0 %v1225, 64
        %v1301 = vpop.permute.xlu0 %1300
        %v1303 = vadd.f32 %v1299, %v1301
        %v1304 = vpack.c.bf16 %v1303, %v1303
        %s1305 = scalar_lea.vmem [#allocation10], 16
        %v1306 = vld [vmem:[%s1305] sm:$0xf]
        %v1307 = vld [vmem:[%s1305 + $0x4] sm:$0xf]
        %v1308 = vld [vmem:[%s1305 + $0x8] sm:$0xf]
        %v1309 = vld [vmem:[%s1305 + $0xc] sm:$0xf]
        %v1310 = vlaneseq
        %v1311 = vshrl.u32 %v1310, 7
        %v1312 = vsub.s32 3, %v1311
        %v1313 = vrot.slane %v968, %v1312
        %v1318 = vunpack.c.l.b16 %v1306
        %v1319 = vunpack.c.l.b16 %v1307
        %v1320 = vunpack.c.l.b16 %v1308
        %v1321 = vunpack.c.l.b16 %v1309
        %v1322 = vpack.c.b16 %v1319, %v1318
        %v1323 = vpack.c.b16 %v1321, %v1320
        %v1327 = vsel %vm423, %v1304, 0
        %1329 = vmatprep.subr.bf16.mxu0 0
        %1330 = vmatpush1.bf16.msra.mxu0 0
        %1331 = vmatprep.subr.bf16.mxu0 0
        %1332 = vmatpush1.bf16.msra.mxu0 0
        %1333 = vmatprep.subr.bf16.mxu0 0
        %1334 = vmatpush1.bf16.msra.mxu0 0
        %1335 = vmatprep.subr.bf16.mxu0 0
        %1336 = vmatpush1.bf16.msra.mxu0 0
        %1337 = vmatprep.subr.bf16.mxu0 0
        %1338 = vmatpush1.bf16.msra.mxu0 0
        %1339 = vmatprep.subr.bf16.mxu0 0
        %1340 = vmatpush1.bf16.msra.mxu0 0
        %1341 = vmatprep.subr.bf16.mxu0 0
        %1342 = vmatpush1.bf16.msra.mxu0 %v1323
        %1343 = vmatprep.subr.bf16.mxu0 0
        %1344 = vmatpush1.bf16.msra.mxu0 %v1322
        %1345 = vmatprep.subr.bf16.mxu0 0
        %1346 = vmatpush2.bf16.msra.mxu0 0
        %1347 = vmatprep.subr.bf16.mxu0 0
        %1348 = vmatpush2.bf16.msra.mxu0 0
        %1349 = vmatprep.subr.bf16.mxu0 0
        %1350 = vmatpush2.bf16.msra.mxu0 0
        %1351 = vmatprep.subr.bf16.mxu0 0
        %1352 = vmatpush2.bf16.msra.mxu0 0
        %1353 = vmatprep.subr.bf16.mxu0 0
        %1354 = vmatpush2.bf16.msra.mxu0 0
        %1355 = vmatprep.subr.bf16.mxu0 0
        %1356 = vmatpush2.bf16.msra.mxu0 0
        %1357 = vmatprep.subr.bf16.mxu0 0
        %1358 = vmatpush2.bf16.msra.mxu0 0
        %1359 = vmatprep.subr.bf16.mxu0 0
        %1360 = vmatpush2.bf16.msra.mxu0 0
        %1361 = vmatprep.mubr.bf16.mxu0 0
        %1362 = vmatmul.mubr.bf16.gmra.mxu0 %v1327
        %v1363 = vpop.f32.mrf.mxu0
        %v1364 = vadd.f32 %v1313, %v1363
        %v1365 = vpop.f32.mrf.mxu0
        %v1366 = vpop.f32.mrf.mxu0
        %v1367 = vpop.f32.mrf.mxu0
        %1368 = vdwg.mxu0
        %v1369 = vmul.f32 %v1364, %v1364
        %v1370 = vmul.f32 %v1364, %v1369
        %v1371 = vmul.f32 %v1370, 0.044715
        %v1372 = vadd.f32 %v1364, %v1371
        %v1373 = vmul.f32 %v1372, 0.7978846
        %v1374 = vtanh.pop %v1373
        %v1375 = vadd.f32 %v1374, 1.0
        %v1376 = vmul.f32 %v1375, 0.5
        %v1377 = vmul.f32 %v1364, %v1376
        %v1378 = vpack.c.bf16 %v1377, %v1377
        %s1379 = scalar_lea.vmem %s8, 32
        %v1380 = vld [vmem:[%s1379] sm:$0xf]
        %v1381 = vld [vmem:[%s1379 + $0x4] sm:$0xf]
        %v1382 = vld [vmem:[%s1379 + $0x8] sm:$0xf]
        %v1383 = vld [vmem:[%s1379 + $0xc] sm:$0xf]
        %v1384 = vld [vmem:[%s1379 + $0x10] sm:$0xf]
        %v1385 = vld [vmem:[%s1379 + $0x14] sm:$0xf]
        %v1386 = vld [vmem:[%s1379 + $0x18] sm:$0xf]
        %v1387 = vld [vmem:[%s1379 + $0x1c] sm:$0xf]
        %v1388 = vlaneseq
        %v1389 = vshrl.u32 %v1388, 7
        %v1390 = vsub.s32 2, %v1389
        %v1391 = vrot.slane %v968, %v1390
        %v1400 = vunpack.c.l.b16 %v1380
        %v1401 = vunpack.c.l.b16 %v1381
        %v1402 = vunpack.c.l.b16 %v1382
        %v1403 = vunpack.c.l.b16 %v1383
        %v1404 = vunpack.c.l.b16 %v1384
        %v1405 = vunpack.c.l.b16 %v1385
        %v1406 = vunpack.c.l.b16 %v1386
        %v1407 = vunpack.c.l.b16 %v1387
        %v1408 = vpack.c.b16 %v1401, %v1400
        %v1409 = vpack.c.b16 %v1403, %v1402
        %v1410 = vpack.c.b16 %v1405, %v1404
        %v1411 = vpack.c.b16 %v1407, %v1406
        %v1417 = vsel %vm900, %v1378, 0
        %1419 = vmatprep.subr.bf16.mxu0 0
        %1420 = vmatpush1.bf16.msra.mxu0 0
        %1421 = vmatprep.subr.bf16.mxu0 0
        %1422 = vmatpush1.bf16.msra.mxu0 0
        %1423 = vmatprep.subr.bf16.mxu0 0
        %1424 = vmatpush1.bf16.msra.mxu0 0
        %1425 = vmatprep.subr.bf16.mxu0 0
        %1426 = vmatpush1.bf16.msra.mxu0 0
        %1427 = vmatprep.subr.bf16.mxu0 0
        %1428 = vmatpush1.bf16.msra.mxu0 %v1411
        %1429 = vmatprep.subr.bf16.mxu0 0
        %1430 = vmatpush1.bf16.msra.mxu0 %v1410
        %1431 = vmatprep.subr.bf16.mxu0 0
        %1432 = vmatpush1.bf16.msra.mxu0 %v1409
        %1433 = vmatprep.subr.bf16.mxu0 0
        %1434 = vmatpush1.bf16.msra.mxu0 %v1408
        %1435 = vmatprep.subr.bf16.mxu0 0
        %1436 = vmatpush2.bf16.msra.mxu0 0
        %1437 = vmatprep.subr.bf16.mxu0 0
        %1438 = vmatpush2.bf16.msra.mxu0 0
        %1439 = vmatprep.subr.bf16.mxu0 0
        %1440 = vmatpush2.bf16.msra.mxu0 0
        %1441 = vmatprep.subr.bf16.mxu0 0
        %1442 = vmatpush2.bf16.msra.mxu0 0
        %1443 = vmatprep.subr.bf16.mxu0 0
        %1444 = vmatpush2.bf16.msra.mxu0 0
        %1445 = vmatprep.subr.bf16.mxu0 0
        %1446 = vmatpush2.bf16.msra.mxu0 0
        %1447 = vmatprep.subr.bf16.mxu0 0
        %1448 = vmatpush2.bf16.msra.mxu0 0
        %1449 = vmatprep.subr.bf16.mxu0 0
        %1450 = vmatpush2.bf16.msra.mxu0 0
        %1451 = vmatprep.mubr.bf16.mxu0 0
        %1452 = vmatmul.mubr.bf16.gmra.mxu0 %v1417
        %v1453 = vpop.f32.mrf.mxu0
        %v1454 = vadd.f32 %v1391, %v1453
        %v1455 = vpop.f32.mrf.mxu0
        %v1456 = vpop.f32.mrf.mxu0
        %v1457 = vpop.f32.mrf.mxu0
        %1458 = vdwg.mxu0
        %v1459 = vadd.f32 %v1303, %v1454
        %v1460 = vsel %vm423, %v1459, 0.0
        %1461 = vadd.xlane.f32.xlu0 %v1460
        %v1462 = vpop.xlane.xlu0 %1461
        %v1463 = vmul.f32 %v1462, %v427
        %v1464 = vsub.f32 %v1459, %v1463
        %v1465 = vmul.f32 %v1464, %v1464
        %v1466 = vsel %vm423, %v1465, 0.0
        %1467 = vadd.xlane.f32.xlu0 %v1466
        %v1468 = vpop.xlane.xlu0 %1467
        %v1469 = vmul.f32 %v1468, %v427
        %v1470 = vadd.f32 %v1469, 1e-12
        %v1471 = vrsqrt.pop %v1470
        %v1472 = vmul.f32 %v1464, %v1471
        %1474 = vrot.lane.b32.xlu0 %v1391, 96
        %v1475 = vpop.permute.xlu0 %1474
        %v1477 = vmul.f32 %v1472, %v1475
        %1478 = vrot.lane.b32.xlu0 %v1391, 64
        %v1479 = vpop.permute.xlu0 %1478
        %v1481 = vadd.f32 %v1477, %v1479
        %1482 = vst.msk [vmem:[#allocation2] sm:$0xff] %vm423, %v1481
        %s1483 = smul.u32 %s32, 128
        %s1484 = sld [smem:[#allocation4 + %s1483]]
        %s1485 = scalar_lea.vmem [#allocation2], %s1484
        %v1486 = vld [vmem:[%s1485] sm:$0x1]
        %s1487 = sadd.s32 %s1483, 1
        %s1488 = sld [smem:[#allocation4 + %s1487]]
        %s1489 = scalar_lea.vmem [#allocation2], %s1488
        %v1490 = vld [vmem:[%s1489] sm:$0x1]
        %s1491 = sadd.s32 %s1483, 2
        %s1492 = sld [smem:[#allocation4 + %s1491]]
        %s1493 = scalar_lea.vmem [#allocation2], %s1492
        %v1494 = vld [vmem:[%s1493] sm:$0x1]
        %s1495 = sadd.s32 %s1483, 3
        %s1496 = sld [smem:[#allocation4 + %s1495]]
        %s1497 = scalar_lea.vmem [#allocation2], %s1496
        %v1498 = vld [vmem:[%s1497] sm:$0x1]
        %s1499 = sadd.s32 %s1483, 4
        %s1500 = sld [smem:[#allocation4 + %s1499]]
        %s1501 = scalar_lea.vmem [#allocation2], %s1500
        %v1502 = vld [vmem:[%s1501] sm:$0x1]
        %v1504 = vrot.slane %v1490, 7
        %v1507 = vrot.slane %v1494, 6
        %v1510 = vrot.slane %v1498, 5
        %v1513 = vrot.slane %v1502, 4
        %vm1515 = vcmask 1040384
        %v1516 = vsel %vm1515, %v1486, %v1504
        %vm1517 = vcmask 1041408
        %v1518 = vsel %vm1517, %v1516, %v1507
        %vm1519 = vcmask 1042432
        %v1520 = vsel %vm1519, %v1518, %v1510
        %v1521 = vsel %vm643, %v1520, %v1513
        %vm1522 = vcmask 258048
        %1523 = vst.msk [vmem:[%s413] sm:$0x1f] %vm1522, %v1521
        %p1524 = scmp.lt.s32.totalorder %s32, 1
        %s1525 = scalar_select %p1524, %s32, 1
        %s1526 = smul.addr %s1525, 8
        %s1527 = scalar_lea.vmem %s10, %s1526
        // Predicated region
        $region73: #{tpu_custom_call.1} parent=55 // pred_check
          %p1528 = pneg %p249
        $region74: #{tpu_custom_call.1} parent=55 // pred_check_branch
          %1530 = sbr.rel (%p1528) target = $region76
        $region75: #{tpu_custom_call.1} parent=55 // pred_region
          _
        $region76: #{tpu_custom_call.1} parent=55 // pred_fallthru
          _
      $region56: #{tpu_custom_call.1} parent=5 // pred_fallthru
        _
      %p1531 = scmp.le.s32.totalorder 2, %s27
      // Predicated region
      $region77: #{tpu_custom_call.1} parent=5 // pred_check
        %p1532 = pneg %p1531
      $region78: #{tpu_custom_call.1} parent=5 // pred_check_branch
        %1534 = sbr.rel (%p1532) target = $region80
      $region79: #{tpu_custom_call.1} parent=5 // pred_region
        %s1535 = ssub.s32 %s27, 2
        // Predicated region
        $region81: #{tpu_custom_call.1} parent=79 // pred_check
          %p1536 = pneg %p255
        $region82: #{tpu_custom_call.1} parent=79 // pred_check_branch
          %1538 = sbr.rel (%p1536) target = $region84
        $region83: #{tpu_custom_call.1} parent=79 // pred_region
          %p1539 = scmp.lt.s32.totalorder %s33, 1
          %s1540 = scalar_select %p1539, %s33, 1
          %s1541 = smul.addr %s1540, 8
          %s1542 = scalar_lea.vmem %s10, %s1541
        $region84: #{tpu_custom_call.1} parent=79 // pred_fallthru
          _
      $region80: #{tpu_custom_call.1} parent=5 // pred_fallthru
        _
    $region6: #{tpu_custom_call.1} parent=1 // loop_footer
      %s31 = sadd.s32 1, %s27
    $region7: #{tpu_custom_call.1} parent=1 // loop_footer_branch
      %26 = sbr.rel target = $region3
    $region8: #{tpu_custom_call.1} parent=1 // loop_exit
      _
    %1543 = vsyncpa [#allocation6], 1
    %s1544 = scalar_lea.sflag [#allocation6], 1
    %1545 = vsyncpa %s1544, 1
    %1546 = vsyncpa [#allocation8], 1
    %s1547 = scalar_lea.sflag [#allocation8], 1
    %1548 = vsyncpa %s1547, 1
    %1549 = vsyncpa [#allocation11], 1

</llo_original>
